<compile_context>
chip_gen: v5e
topology: v5e:2x2
jax: 0.10.0
libtpu: 0.0.40
codegen_flags: <defaults>
</compile_context>

<pallas_src>
import functools

import jax
import jax.numpy as jnp
from jax.experimental import pallas as pl
from jax.experimental.pallas import tpu as pltpu


def gru_seq_kernel(x_ref, h0_ref, wcat_ref, ucat_ref, wy_ref,
                   out_ref, hfinal_ref, gx_scr, hall_scr,
                   *, seq_len, batch_pad, hidden_pad, n_valid_out):
    Bp, Hp = batch_pad, hidden_pad

    # ---- Phase A: hoisted input-to-hidden projection for ALL T steps ------
    # One (T*Bp, Hp) @ (Hp, 3*Hp) matmul instead of T tiny ones in the loop.
    gx_scr[...] = jnp.dot(x_ref[...], wcat_ref[...],
                          preferred_element_type=jnp.float32)

    ucat = ucat_ref[...]  # hoist the weight load out of the recurrence

    # ---- Phase B: the serial recurrence (only h @ U_cat per step) ---------
    def step(t, h):
        row = pl.multiple_of(t * Bp, Bp)
        gx = gx_scr[pl.ds(row, Bp), :]                          # (Bp, 3*Hp)
        gh = jnp.dot(h, ucat, preferred_element_type=jnp.float32)
        # Each gate lives in its own 128-lane slab -> whole-vreg slices.
        z = jax.nn.sigmoid(gx[:, 0:Hp] + gh[:, 0:Hp])
        r = jax.nn.sigmoid(gx[:, Hp:2 * Hp] + gh[:, Hp:2 * Hp])
        ht = jnp.tanh(gx[:, 2 * Hp:3 * Hp] + r * gh[:, 2 * Hp:3 * Hp])
        h_new = z * h + (1.0 - z) * ht
        hall_scr[pl.ds(row, Bp), :] = h_new
        return h_new

    h_final = jax.lax.fori_loop(0, seq_len, step, h0_ref[...], unroll=True)
    hfinal_ref[...] = h_final   # single write, not one per step

    # ---- Phase C: hoisted output projection + masked log_softmax ----------
    logits = jnp.dot(hall_scr[...], wy_ref[...],
                     preferred_element_type=jnp.float32)        # (T*Bp, Opad)
    col = jax.lax.broadcasted_iota(jnp.int32, logits.shape, 1)
    logits = jnp.where(col < n_valid_out, logits, jnp.float32(-1e30))
    m = jnp.max(logits, axis=1, keepdims=True)
    shifted = logits - m
    lse = jnp.log(jnp.sum(jnp.exp(shifted), axis=1, keepdims=True))
    out_ref[...] = shifted - lse


def gru_forward_seq(tokens_seq, h0, params):
    """tokens_seq: (T, B) int32 token ids; h0: (B, H) float32.

    Runs the GRU cell over all T steps inside a single pallas_call.
    Returns (log_probs (T, B, O), h_final (B, H)).
    """
    emb = params["embedding_pad"]       # (V, Hp), hidden columns zero-padded
    Hp = emb.shape[1]
    H = params["hidden_size"]
    O = params["output_size"]
    wcat = params["WcatT_pad"]          # (Hp, 3*Hp)
    ucat = params["UcatT_pad"]          # (Hp, 3*Hp)
    wy = params["WyT_pad"]              # (Hp, Opad)
    Opad = wy.shape[1]

    x_emb = emb[tokens_seq]             # (T, B, Hp) gather glue in plain JAX
    T, B, _ = x_emb.shape

    Bp = ((B + 7) // 8) * 8             # pad batch to the 8-sublane granule
    if Bp != B:
        x_emb = jnp.pad(x_emb, ((0, 0), (0, Bp - B), (0, 0)))
    h0p = jnp.zeros((Bp, Hp), jnp.float32).at[:B, :H].set(h0)

    x_flat = x_emb.reshape(T * Bp, Hp)  # contiguous reshape, no data movement

    kernel = functools.partial(gru_seq_kernel, seq_len=T, batch_pad=Bp,
                               hidden_pad=Hp, n_valid_out=O)

    out_flat, h_final = pl.pallas_call(
        kernel,
        out_shape=(
            jax.ShapeDtypeStruct((T * Bp, Opad), jnp.float32),
            jax.ShapeDtypeStruct((Bp, Hp), jnp.float32),
        ),
        grid=(1,),   # single invocation: everything fits VMEM at these sizes
        in_specs=[
            pl.BlockSpec((T * Bp, Hp), lambda i: (0, 0)),     # embedded tokens
            pl.BlockSpec((Bp, Hp), lambda i: (0, 0)),         # h0
            pl.BlockSpec((Hp, 3 * Hp), lambda i: (0, 0)),     # W_cat (padded slabs)
            pl.BlockSpec((Hp, 3 * Hp), lambda i: (0, 0)),     # U_cat (padded slabs)
            pl.BlockSpec((Hp, Opad), lambda i: (0, 0)),       # Wy (lane-dense)
        ],
        out_specs=(
            pl.BlockSpec((T * Bp, Opad), lambda i: (0, 0)),   # log-probs, lane-dense
            pl.BlockSpec((Bp, Hp), lambda i: (0, 0)),         # final hidden
        ),
        scratch_shapes=[
            pltpu.VMEM((T * Bp, 3 * Hp), jnp.float32),   # hoisted GX = x @ W_cat
            pltpu.VMEM((T * Bp, Hp), jnp.float32),       # all per-step hidden states
        ],
        compiler_params=pltpu.CompilerParams(
            dimension_semantics=("arbitrary",)),
    )(x_flat, h0p, wcat, ucat, wy)

    out = out_flat.reshape(T, Bp, Opad)[:, :B, :O]
    return out, h_final[:B, :H]


def gru_forward(x_tokens, h, params):
    """Single-step forward matching the PyTorch GRU.forward (p1..p6 = None)."""
    out_seq, h_new = gru_forward_seq(x_tokens[None, :], h, params)
    return out_seq[0], h_new


def xavier_uniform(key, fan_out, fan_in, gain):
    # Matches torch.nn.init.xavier_uniform_ on a (fan_out, fan_in) weight.
    bound = gain * jnp.sqrt(6.0 / (fan_in + fan_out))
    return jax.random.uniform(key, (fan_out, fan_in), jnp.float32, -bound, bound)


def _round_up(x, m):
    return ((x + m - 1) // m) * m


def init_params(key, input_size, hidden_size, output_size):
    keys = jax.random.split(key, 8)
    # nn.Embedding default init: N(0, 1)
    embedding = jax.random.normal(keys[0], (input_size, hidden_size), jnp.float32)
    Wz = xavier_uniform(keys[1], hidden_size, hidden_size, 0.01)
    Wr = xavier_uniform(keys[2], hidden_size, hidden_size, 0.01)
    Wh = xavier_uniform(keys[3], hidden_size, hidden_size, 0.01)
    Uz = xavier_uniform(keys[4], hidden_size, hidden_size, 0.01)
    Ur = xavier_uniform(keys[5], hidden_size, hidden_size, 0.01)
    Uh = xavier_uniform(keys[6], hidden_size, hidden_size, 0.01)
    # Wy keeps PyTorch Linear's default init; any deterministic init is fine here.
    bound_wy = 1.0 / jnp.sqrt(hidden_size)
    Wy = jax.random.uniform(keys[7], (output_size, hidden_size), jnp.float32,
                            -bound_wy, bound_wy)

    # Kernel-side packing: hidden dim padded to a full 128-lane slab (Hp), each
    # gate gets its own slab of the fused weight so in-loop slices are whole
    # vregs; vocab dim padded to a lane-dense multiple of 128.  Zero padding
    # guarantees padded lanes of the hidden state remain exactly zero.
    Hp = _round_up(hidden_size, 128)
    Opad = _round_up(output_size, 128)

    embedding_pad = (jnp.zeros((input_size, Hp), jnp.float32)
                     .at[:, :hidden_size].set(embedding))

    def pack_gates(mats):
        out = jnp.zeros((Hp, 3 * Hp), jnp.float32)
        for g, mat in enumerate(mats):
            out = out.at[:hidden_size, g * Hp:g * Hp + hidden_size].set(mat.T)
        return out

    WcatT_pad = pack_gates([Wz, Wr, Wh])
    UcatT_pad = pack_gates([Uz, Ur, Uh])
    WyT_pad = (jnp.zeros((Hp, Opad), jnp.float32)
               .at[:hidden_size, :output_size].set(Wy.T))

    return {
        "embedding_pad": embedding_pad,
        "WcatT_pad": WcatT_pad, "UcatT_pad": UcatT_pad, "WyT_pad": WyT_pad,
        "hidden_size": hidden_size, "output_size": output_size,
        # Raw (unpadded) params kept only for the pure-JAX reference.
        "embedding": embedding,
        "WzT": Wz.T, "WrT": Wr.T, "WhT": Wh.T,
        "UzT": Uz.T, "UrT": Ur.T, "UhT": Uh.T, "WyT": Wy.T,
    }


def gru_reference_step(x_tokens, h, params):
    x = params["embedding"][x_tokens]
    z = jax.nn.sigmoid(x @ params["WzT"] + h @ params["UzT"])
    r = jax.nn.sigmoid(x @ params["WrT"] + h @ params["UrT"])
    ht = jnp.tanh(x @ params["WhT"] + r * (h @ params["UhT"]))
    h_new = z * h + (1.0 - z) * ht
    out = jax.nn.log_softmax(h_new @ params["WyT"], axis=1)
    return out, h_new


if __name__ == "__main__":
    input_size = 65    # vocab (Shakespeare char-level)
    hidden_size = 32
    output_size = 65
    batch = 4
    seq_len = 8

    key = jax.random.PRNGKey(0)
    kp, kx = jax.random.split(key)
    params = init_params(kp, input_size, hidden_size, output_size)

    tokens = jax.random.randint(kx, (seq_len, batch), 0, input_size, dtype=jnp.int32)
    h0 = jnp.zeros((batch, hidden_size), jnp.float32)  # init_hidden(n)

    # Fused-sequence kernel: one pallas_call for all seq_len steps.
    out_seq, h_final = gru_forward_seq(tokens, h0, params)
    out_seq = jax.block_until_ready(out_seq)
    h_final = jax.block_until_ready(h_final)

    # Pure-JAX reference: the per-step cell applied sequentially.
    h_ref = h0
    outs_ref = []
    for t in range(seq_len):
        o_t, h_ref = gru_reference_step(tokens[t], h_ref, params)
        outs_ref.append(o_t)
    out_ref = jnp.stack(outs_ref, axis=0)

    assert out_seq.shape == (seq_len, batch, output_size)
    assert h_final.shape == (batch, hidden_size)
    assert jnp.allclose(out_seq, out_ref, atol=1e-5), "log_softmax output mismatch"
    assert jnp.allclose(h_final, h_ref, atol=1e-5), "hidden state mismatch"

    # Also exercise the single-step entry point (matches PyTorch forward exactly).
    out1, h1 = gru_forward(tokens[0], h0, params)
    out1 = jax.block_until_ready(out1)
    h1 = jax.block_until_ready(h1)
    o1_ref, h1_ref = gru_reference_step(tokens[0], h0, params)
    assert jnp.allclose(out1, o1_ref, atol=1e-5), "single-step output mismatch"
    assert jnp.allclose(h1, h1_ref, atol=1e-5), "single-step hidden mismatch"

    print("KERNEL_OK")
</pallas_src>

<mosaic_0001>
module attributes {stable_mosaic.version = 11 : i64} {
  func.func @gru_seq_kernel(%arg0: i32, %arg1: memref<64x128xf32, #tpu.memory_space<vmem>>, %arg2: memref<8x128xf32, #tpu.memory_space<vmem>>, %arg3: memref<128x384xf32, #tpu.memory_space<vmem>>, %arg4: memref<128x384xf32, #tpu.memory_space<vmem>>, %arg5: memref<128x128xf32, #tpu.memory_space<vmem>>, %arg6: memref<64x128xf32, #tpu.memory_space<vmem>>, %arg7: memref<8x128xf32, #tpu.memory_space<vmem>>, %arg8: memref<64x384xf32, #tpu.memory_space<vmem>>, %arg9: memref<64x128xf32, #tpu.memory_space<vmem>>) attributes {dimension_semantics = [#tpu.dimension_semantics<arbitrary>], iteration_bounds = array<i64: 1>, scalar_prefetch = 0 : i64, scratch_operands = 2 : i64, tpu.core_type = #tpu.core_type<tc>, window_params = [{pipeline_mode = #tpu.pipeline_mode<synchronous>, transform_indices = @transform_0, window_bounds = array<i64: 64, 128>}, {pipeline_mode = #tpu.pipeline_mode<synchronous>, transform_indices = @transform_1, window_bounds = array<i64: 8, 128>}, {pipeline_mode = #tpu.pipeline_mode<synchronous>, transform_indices = @transform_2, window_bounds = array<i64: 128, 384>}, {pipeline_mode = #tpu.pipeline_mode<synchronous>, transform_indices = @transform_3, window_bounds = array<i64: 128, 384>}, {pipeline_mode = #tpu.pipeline_mode<synchronous>, transform_indices = @transform_4, window_bounds = array<i64: 128, 128>}, {pipeline_mode = #tpu.pipeline_mode<synchronous>, transform_indices = @transform_5, window_bounds = array<i64: 64, 128>}, {pipeline_mode = #tpu.pipeline_mode<synchronous>, transform_indices = @transform_6, window_bounds = array<i64: 8, 128>}]} {
    %c0 = arith.constant 0 : index
    %c0_0 = arith.constant 0 : index
    %0 = vector.load %arg1[%c0, %c0_0] : memref<64x128xf32, #tpu.memory_space<vmem>>, vector<64x128xf32>
    %c0_1 = arith.constant 0 : index
    %c0_2 = arith.constant 0 : index
    %1 = vector.load %arg3[%c0_1, %c0_2] : memref<128x384xf32, #tpu.memory_space<vmem>>, vector<128x384xf32>
    %cst = arith.constant dense<0.000000e+00> : vector<64x384xf32>
    %2 = tpu.matmul %0, %1, %cst {dimension_numbers = #tpu.dot_dimension_numbers<[1], [0], [0], [1], [0, 0, 1, 1], [], []>} : vector<64x128xf32>, vector<128x384xf32>, vector<64x384xf32> -> vector<64x384xf32>
    %c0_3 = arith.constant 0 : index
    %c0_4 = arith.constant 0 : index
    %3 = vector.load %arg8[%c0_3, %c0_4] : memref<64x384xf32, #tpu.memory_space<vmem>>, vector<64x384xf32>
    tpu.vector_store %arg8[%c0_3, %c0_4], %2 {strides = array<i32>} : memref<64x384xf32, #tpu.memory_space<vmem>>, vector<64x384xf32>,
    %c0_5 = arith.constant 0 : index
    %c0_6 = arith.constant 0 : index
    %4 = vector.load %arg4[%c0_5, %c0_6] : memref<128x384xf32, #tpu.memory_space<vmem>>, vector<128x384xf32>
    %c0_7 = arith.constant 0 : index
    %c0_8 = arith.constant 0 : index
    %5 = vector.load %arg2[%c0_7, %c0_8] : memref<8x128xf32, #tpu.memory_space<vmem>>, vector<8x128xf32>
    %c0_i32 = arith.constant 0 : i32
    %c8_i32 = arith.constant 8 : i32
    %6 = arith.muli %c0_i32, %c8_i32 : i32
    %7 = tpu.assume_multiple %6, 8 : i32
    %8 = arith.index_cast %7 : i32 to index
    %c0_9 = arith.constant 0 : index
    %9 = vector.load %arg8[%8, %c0_9] : memref<64x384xf32, #tpu.memory_space<vmem>>, vector<8x384xf32>
    %cst_10 = arith.constant dense<0.000000e+00> : vector<8x384xf32>
    %10 = tpu.matmul %5, %4, %cst_10 {dimension_numbers = #tpu.dot_dimension_numbers<[1], [0], [0], [1], [0, 0, 1, 1], [], []>} : vector<8x128xf32>, vector<128x384xf32>, vector<8x384xf32> -> vector<8x384xf32>
    %11 = vector.extract_strided_slice %9 {offsets = [0, 0], sizes = [8, 128], strides = [1, 1]} : vector<8x384xf32> to vector<8x128xf32>
    %12 = vector.extract_strided_slice %10 {offsets = [0, 0], sizes = [8, 128], strides = [1, 1]} : vector<8x384xf32> to vector<8x128xf32>
    %13 = arith.addf %11, %12 : vector<8x128xf32>
    %14 = arith.negf %13 : vector<8x128xf32>
    %15 = math.exp %14 : vector<8x128xf32>
    %cst_11 = arith.constant 1.000000e+00 : f32
    %16 = vector.broadcast %cst_11 : f32 to vector<8x128xf32>
    %17 = arith.addf %16, %15 : vector<8x128xf32>
    %18 = arith.divf %16, %17 : vector<8x128xf32>
    %19 = vector.extract_strided_slice %9 {offsets = [0, 128], sizes = [8, 128], strides = [1, 1]} : vector<8x384xf32> to vector<8x128xf32>
    %20 = vector.extract_strided_slice %10 {offsets = [0, 128], sizes = [8, 128], strides = [1, 1]} : vector<8x384xf32> to vector<8x128xf32>
    %21 = arith.addf %19, %20 : vector<8x128xf32>
    %22 = arith.negf %21 : vector<8x128xf32>
    %23 = math.exp %22 : vector<8x128xf32>
    %cst_12 = arith.constant 1.000000e+00 : f32
    %24 = vector.broadcast %cst_12 : f32 to vector<8x128xf32>
    %25 = arith.addf %24, %23 : vector<8x128xf32>
    %26 = arith.divf %24, %25 : vector<8x128xf32>
    %27 = vector.extract_strided_slice %9 {offsets = [0, 256], sizes = [8, 128], strides = [1, 1]} : vector<8x384xf32> to vector<8x128xf32>
    %28 = vector.extract_strided_slice %10 {offsets = [0, 256], sizes = [8, 128], strides = [1, 1]} : vector<8x384xf32> to vector<8x128xf32>
    %29 = arith.mulf %26, %28 : vector<8x128xf32>
    %30 = arith.addf %27, %29 : vector<8x128xf32>
    %31 = math.tanh %30 : vector<8x128xf32>
    %32 = arith.mulf %18, %5 : vector<8x128xf32>
    %cst_13 = arith.constant 1.000000e+00 : f32
    %33 = vector.broadcast %cst_13 : f32 to vector<8x128xf32>
    %34 = arith.subf %33, %18 : vector<8x128xf32>
    %35 = arith.mulf %34, %31 : vector<8x128xf32>
    %36 = arith.addf %32, %35 : vector<8x128xf32>
    %37 = arith.index_cast %7 : i32 to index
    %c0_14 = arith.constant 0 : index
    %38 = vector.load %arg9[%37, %c0_14] : memref<64x128xf32, #tpu.memory_space<vmem>>, vector<8x128xf32>
    tpu.vector_store %arg9[%37, %c0_14], %36 {strides = array<i32>} : memref<64x128xf32, #tpu.memory_space<vmem>>, vector<8x128xf32>,
    %c1_i32 = arith.constant 1 : i32
    %c8_i32_15 = arith.constant 8 : i32
    %39 = arith.muli %c1_i32, %c8_i32_15 : i32
    %40 = tpu.assume_multiple %39, 8 : i32
    %41 = arith.index_cast %40 : i32 to index
    %c0_16 = arith.constant 0 : index
    %42 = vector.load %arg8[%41, %c0_16] : memref<64x384xf32, #tpu.memory_space<vmem>>, vector<8x384xf32>
    %cst_17 = arith.constant dense<0.000000e+00> : vector<8x384xf32>
    %43 = tpu.matmul %36, %4, %cst_17 {dimension_numbers = #tpu.dot_dimension_numbers<[1], [0], [0], [1], [0, 0, 1, 1], [], []>} : vector<8x128xf32>, vector<128x384xf32>, vector<8x384xf32> -> vector<8x384xf32>
    %44 = vector.extract_strided_slice %42 {offsets = [0, 0], sizes = [8, 128], strides = [1, 1]} : vector<8x384xf32> to vector<8x128xf32>
    %45 = vector.extract_strided_slice %43 {offsets = [0, 0], sizes = [8, 128], strides = [1, 1]} : vector<8x384xf32> to vector<8x128xf32>
    %46 = arith.addf %44, %45 : vector<8x128xf32>
    %47 = arith.negf %46 : vector<8x128xf32>
    %48 = math.exp %47 : vector<8x128xf32>
    %cst_18 = arith.constant 1.000000e+00 : f32
    %49 = vector.broadcast %cst_18 : f32 to vector<8x128xf32>
    %50 = arith.addf %49, %48 : vector<8x128xf32>
    %51 = arith.divf %49, %50 : vector<8x128xf32>
    %52 = vector.extract_strided_slice %42 {offsets = [0, 128], sizes = [8, 128], strides = [1, 1]} : vector<8x384xf32> to vector<8x128xf32>
    %53 = vector.extract_strided_slice %43 {offsets = [0, 128], sizes = [8, 128], strides = [1, 1]} : vector<8x384xf32> to vector<8x128xf32>
    %54 = arith.addf %52, %53 : vector<8x128xf32>
    %55 = arith.negf %54 : vector<8x128xf32>
    %56 = math.exp %55 : vector<8x128xf32>
    %cst_19 = arith.constant 1.000000e+00 : f32
    %57 = vector.broadcast %cst_19 : f32 to vector<8x128xf32>
    %58 = arith.addf %57, %56 : vector<8x128xf32>
    %59 = arith.divf %57, %58 : vector<8x128xf32>
    %60 = vector.extract_strided_slice %42 {offsets = [0, 256], sizes = [8, 128], strides = [1, 1]} : vector<8x384xf32> to vector<8x128xf32>
    %61 = vector.extract_strided_slice %43 {offsets = [0, 256], sizes = [8, 128], strides = [1, 1]} : vector<8x384xf32> to vector<8x128xf32>
    %62 = arith.mulf %59, %61 : vector<8x128xf32>
    %63 = arith.addf %60, %62 : vector<8x128xf32>
    %64 = math.tanh %63 : vector<8x128xf32>
    %65 = arith.mulf %51, %36 : vector<8x128xf32>
    %cst_20 = arith.constant 1.000000e+00 : f32
    %66 = vector.broadcast %cst_20 : f32 to vector<8x128xf32>
    %67 = arith.subf %66, %51 : vector<8x128xf32>
    %68 = arith.mulf %67, %64 : vector<8x128xf32>
    %69 = arith.addf %65, %68 : vector<8x128xf32>
    %70 = arith.index_cast %40 : i32 to index
    %c0_21 = arith.constant 0 : index
    %71 = vector.load %arg9[%70, %c0_21] : memref<64x128xf32, #tpu.memory_space<vmem>>, vector<8x128xf32>
    tpu.vector_store %arg9[%70, %c0_21], %69 {strides = array<i32>} : memref<64x128xf32, #tpu.memory_space<vmem>>, vector<8x128xf32>,
    %c2_i32 = arith.constant 2 : i32
    %c8_i32_22 = arith.constant 8 : i32
    %72 = arith.muli %c2_i32, %c8_i32_22 : i32
    %73 = tpu.assume_multiple %72, 8 : i32
    %74 = arith.index_cast %73 : i32 to index
    %c0_23 = arith.constant 0 : index
    %75 = vector.load %arg8[%74, %c0_23] : memref<64x384xf32, #tpu.memory_space<vmem>>, vector<8x384xf32>
    %cst_24 = arith.constant dense<0.000000e+00> : vector<8x384xf32>
    %76 = tpu.matmul %69, %4, %cst_24 {dimension_numbers = #tpu.dot_dimension_numbers<[1], [0], [0], [1], [0, 0, 1, 1], [], []>} : vector<8x128xf32>, vector<128x384xf32>, vector<8x384xf32> -> vector<8x384xf32>
    %77 = vector.extract_strided_slice %75 {offsets = [0, 0], sizes = [8, 128], strides = [1, 1]} : vector<8x384xf32> to vector<8x128xf32>
    %78 = vector.extract_strided_slice %76 {offsets = [0, 0], sizes = [8, 128], strides = [1, 1]} : vector<8x384xf32> to vector<8x128xf32>
    %79 = arith.addf %77, %78 : vector<8x128xf32>
    %80 = arith.negf %79 : vector<8x128xf32>
    %81 = math.exp %80 : vector<8x128xf32>
    %cst_25 = arith.constant 1.000000e+00 : f32
    %82 = vector.broadcast %cst_25 : f32 to vector<8x128xf32>
    %83 = arith.addf %82, %81 : vector<8x128xf32>
    %84 = arith.divf %82, %83 : vector<8x128xf32>
    %85 = vector.extract_strided_slice %75 {offsets = [0, 128], sizes = [8, 128], strides = [1, 1]} : vector<8x384xf32> to vector<8x128xf32>
    %86 = vector.extract_strided_slice %76 {offsets = [0, 128], sizes = [8, 128], strides = [1, 1]} : vector<8x384xf32> to vector<8x128xf32>
    %87 = arith.addf %85, %86 : vector<8x128xf32>
    %88 = arith.negf %87 : vector<8x128xf32>
    %89 = math.exp %88 : vector<8x128xf32>
    %cst_26 = arith.constant 1.000000e+00 : f32
    %90 = vector.broadcast %cst_26 : f32 to vector<8x128xf32>
    %91 = arith.addf %90, %89 : vector<8x128xf32>
    %92 = arith.divf %90, %91 : vector<8x128xf32>
    %93 = vector.extract_strided_slice %75 {offsets = [0, 256], sizes = [8, 128], strides = [1, 1]} : vector<8x384xf32> to vector<8x128xf32>
    %94 = vector.extract_strided_slice %76 {offsets = [0, 256], sizes = [8, 128], strides = [1, 1]} : vector<8x384xf32> to vector<8x128xf32>
    %95 = arith.mulf %92, %94 : vector<8x128xf32>
    %96 = arith.addf %93, %95 : vector<8x128xf32>
    %97 = math.tanh %96 : vector<8x128xf32>
    %98 = arith.mulf %84, %69 : vector<8x128xf32>
    %cst_27 = arith.constant 1.000000e+00 : f32
    %99 = vector.broadcast %cst_27 : f32 to vector<8x128xf32>
    %100 = arith.subf %99, %84 : vector<8x128xf32>
    %101 = arith.mulf %100, %97 : vector<8x128xf32>
    %102 = arith.addf %98, %101 : vector<8x128xf32>
    %103 = arith.index_cast %73 : i32 to index
    %c0_28 = arith.constant 0 : index
    %104 = vector.load %arg9[%103, %c0_28] : memref<64x128xf32, #tpu.memory_space<vmem>>, vector<8x128xf32>
    tpu.vector_store %arg9[%103, %c0_28], %102 {strides = array<i32>} : memref<64x128xf32, #tpu.memory_space<vmem>>, vector<8x128xf32>,
    %c3_i32 = arith.constant 3 : i32
    %c8_i32_29 = arith.constant 8 : i32
    %105 = arith.muli %c3_i32, %c8_i32_29 : i32
    %106 = tpu.assume_multiple %105, 8 : i32
    %107 = arith.index_cast %106 : i32 to index
    %c0_30 = arith.constant 0 : index
    %108 = vector.load %arg8[%107, %c0_30] : memref<64x384xf32, #tpu.memory_space<vmem>>, vector<8x384xf32>
    %cst_31 = arith.constant dense<0.000000e+00> : vector<8x384xf32>
    %109 = tpu.matmul %102, %4, %cst_31 {dimension_numbers = #tpu.dot_dimension_numbers<[1], [0], [0], [1], [0, 0, 1, 1], [], []>} : vector<8x128xf32>, vector<128x384xf32>, vector<8x384xf32> -> vector<8x384xf32>
    %110 = vector.extract_strided_slice %108 {offsets = [0, 0], sizes = [8, 128], strides = [1, 1]} : vector<8x384xf32> to vector<8x128xf32>
    %111 = vector.extract_strided_slice %109 {offsets = [0, 0], sizes = [8, 128], strides = [1, 1]} : vector<8x384xf32> to vector<8x128xf32>
    %112 = arith.addf %110, %111 : vector<8x128xf32>
    %113 = arith.negf %112 : vector<8x128xf32>
    %114 = math.exp %113 : vector<8x128xf32>
    %cst_32 = arith.constant 1.000000e+00 : f32
    %115 = vector.broadcast %cst_32 : f32 to vector<8x128xf32>
    %116 = arith.addf %115, %114 : vector<8x128xf32>
    %117 = arith.divf %115, %116 : vector<8x128xf32>
    %118 = vector.extract_strided_slice %108 {offsets = [0, 128], sizes = [8, 128], strides = [1, 1]} : vector<8x384xf32> to vector<8x128xf32>
    %119 = vector.extract_strided_slice %109 {offsets = [0, 128], sizes = [8, 128], strides = [1, 1]} : vector<8x384xf32> to vector<8x128xf32>
    %120 = arith.addf %118, %119 : vector<8x128xf32>
    %121 = arith.negf %120 : vector<8x128xf32>
    %122 = math.exp %121 : vector<8x128xf32>
    %cst_33 = arith.constant 1.000000e+00 : f32
    %123 = vector.broadcast %cst_33 : f32 to vector<8x128xf32>
    %124 = arith.addf %123, %122 : vector<8x128xf32>
    %125 = arith.divf %123, %124 : vector<8x128xf32>
    %126 = vector.extract_strided_slice %108 {offsets = [0, 256], sizes = [8, 128], strides = [1, 1]} : vector<8x384xf32> to vector<8x128xf32>
    %127 = vector.extract_strided_slice %109 {offsets = [0, 256], sizes = [8, 128], strides = [1, 1]} : vector<8x384xf32> to vector<8x128xf32>
    %128 = arith.mulf %125, %127 : vector<8x128xf32>
    %129 = arith.addf %126, %128 : vector<8x128xf32>
    %130 = math.tanh %129 : vector<8x128xf32>
    %131 = arith.mulf %117, %102 : vector<8x128xf32>
    %cst_34 = arith.constant 1.000000e+00 : f32
    %132 = vector.broadcast %cst_34 : f32 to vector<8x128xf32>
    %133 = arith.subf %132, %117 : vector<8x128xf32>
    %134 = arith.mulf %133, %130 : vector<8x128xf32>
    %135 = arith.addf %131, %134 : vector<8x128xf32>
    %136 = arith.index_cast %106 : i32 to index
    %c0_35 = arith.constant 0 : index
    %137 = vector.load %arg9[%136, %c0_35] : memref<64x128xf32, #tpu.memory_space<vmem>>, vector<8x128xf32>
    tpu.vector_store %arg9[%136, %c0_35], %135 {strides = array<i32>} : memref<64x128xf32, #tpu.memory_space<vmem>>, vector<8x128xf32>,
    %c4_i32 = arith.constant 4 : i32
    %c8_i32_36 = arith.constant 8 : i32
    %138 = arith.muli %c4_i32, %c8_i32_36 : i32
    %139 = tpu.assume_multiple %138, 8 : i32
    %140 = arith.index_cast %139 : i32 to index
    %c0_37 = arith.constant 0 : index
    %141 = vector.load %arg8[%140, %c0_37] : memref<64x384xf32, #tpu.memory_space<vmem>>, vector<8x384xf32>
    %cst_38 = arith.constant dense<0.000000e+00> : vector<8x384xf32>
    %142 = tpu.matmul %135, %4, %cst_38 {dimension_numbers = #tpu.dot_dimension_numbers<[1], [0], [0], [1], [0, 0, 1, 1], [], []>} : vector<8x128xf32>, vector<128x384xf32>, vector<8x384xf32> -> vector<8x384xf32>
    %143 = vector.extract_strided_slice %141 {offsets = [0, 0], sizes = [8, 128], strides = [1, 1]} : vector<8x384xf32> to vector<8x128xf32>
    %144 = vector.extract_strided_slice %142 {offsets = [0, 0], sizes = [8, 128], strides = [1, 1]} : vector<8x384xf32> to vector<8x128xf32>
    %145 = arith.addf %143, %144 : vector<8x128xf32>
    %146 = arith.negf %145 : vector<8x128xf32>
    %147 = math.exp %146 : vector<8x128xf32>
    %cst_39 = arith.constant 1.000000e+00 : f32
    %148 = vector.broadcast %cst_39 : f32 to vector<8x128xf32>
    %149 = arith.addf %148, %147 : vector<8x128xf32>
    %150 = arith.divf %148, %149 : vector<8x128xf32>
    %151 = vector.extract_strided_slice %141 {offsets = [0, 128], sizes = [8, 128], strides = [1, 1]} : vector<8x384xf32> to vector<8x128xf32>
    %152 = vector.extract_strided_slice %142 {offsets = [0, 128], sizes = [8, 128], strides = [1, 1]} : vector<8x384xf32> to vector<8x128xf32>
    %153 = arith.addf %151, %152 : vector<8x128xf32>
    %154 = arith.negf %153 : vector<8x128xf32>
    %155 = math.exp %154 : vector<8x128xf32>
    %cst_40 = arith.constant 1.000000e+00 : f32
    %156 = vector.broadcast %cst_40 : f32 to vector<8x128xf32>
    %157 = arith.addf %156, %155 : vector<8x128xf32>
    %158 = arith.divf %156, %157 : vector<8x128xf32>
    %159 = vector.extract_strided_slice %141 {offsets = [0, 256], sizes = [8, 128], strides = [1, 1]} : vector<8x384xf32> to vector<8x128xf32>
    %160 = vector.extract_strided_slice %142 {offsets = [0, 256], sizes = [8, 128], strides = [1, 1]} : vector<8x384xf32> to vector<8x128xf32>
    %161 = arith.mulf %158, %160 : vector<8x128xf32>
    %162 = arith.addf %159, %161 : vector<8x128xf32>
    %163 = math.tanh %162 : vector<8x128xf32>
    %164 = arith.mulf %150, %135 : vector<8x128xf32>
    %cst_41 = arith.constant 1.000000e+00 : f32
    %165 = vector.broadcast %cst_41 : f32 to vector<8x128xf32>
    %166 = arith.subf %165, %150 : vector<8x128xf32>
    %167 = arith.mulf %166, %163 : vector<8x128xf32>
    %168 = arith.addf %164, %167 : vector<8x128xf32>
    %169 = arith.index_cast %139 : i32 to index
    %c0_42 = arith.constant 0 : index
    %170 = vector.load %arg9[%169, %c0_42] : memref<64x128xf32, #tpu.memory_space<vmem>>, vector<8x128xf32>
    tpu.vector_store %arg9[%169, %c0_42], %168 {strides = array<i32>} : memref<64x128xf32, #tpu.memory_space<vmem>>, vector<8x128xf32>,
    %c5_i32 = arith.constant 5 : i32
    %c8_i32_43 = arith.constant 8 : i32
    %171 = arith.muli %c5_i32, %c8_i32_43 : i32
    %172 = tpu.assume_multiple %171, 8 : i32
    %173 = arith.index_cast %172 : i32 to index
    %c0_44 = arith.constant 0 : index
    %174 = vector.load %arg8[%173, %c0_44] : memref<64x384xf32, #tpu.memory_space<vmem>>, vector<8x384xf32>
    %cst_45 = arith.constant dense<0.000000e+00> : vector<8x384xf32>
    %175 = tpu.matmul %168, %4, %cst_45 {dimension_numbers = #tpu.dot_dimension_numbers<[1], [0], [0], [1], [0, 0, 1, 1], [], []>} : vector<8x128xf32>, vector<128x384xf32>, vector<8x384xf32> -> vector<8x384xf32>
    %176 = vector.extract_strided_slice %174 {offsets = [0, 0], sizes = [8, 128], strides = [1, 1]} : vector<8x384xf32> to vector<8x128xf32>
    %177 = vector.extract_strided_slice %175 {offsets = [0, 0], sizes = [8, 128], strides = [1, 1]} : vector<8x384xf32> to vector<8x128xf32>
    %178 = arith.addf %176, %177 : vector<8x128xf32>
    %179 = arith.negf %178 : vector<8x128xf32>
    %180 = math.exp %179 : vector<8x128xf32>
    %cst_46 = arith.constant 1.000000e+00 : f32
    %181 = vector.broadcast %cst_46 : f32 to vector<8x128xf32>
    %182 = arith.addf %181, %180 : vector<8x128xf32>
    %183 = arith.divf %181, %182 : vector<8x128xf32>
    %184 = vector.extract_strided_slice %174 {offsets = [0, 128], sizes = [8, 128], strides = [1, 1]} : vector<8x384xf32> to vector<8x128xf32>
    %185 = vector.extract_strided_slice %175 {offsets = [0, 128], sizes = [8, 128], strides = [1, 1]} : vector<8x384xf32> to vector<8x128xf32>
    %186 = arith.addf %184, %185 : vector<8x128xf32>
    %187 = arith.negf %186 : vector<8x128xf32>
    %188 = math.exp %187 : vector<8x128xf32>
    %cst_47 = arith.constant 1.000000e+00 : f32
    %189 = vector.broadcast %cst_47 : f32 to vector<8x128xf32>
    %190 = arith.addf %189, %188 : vector<8x128xf32>
    %191 = arith.divf %189, %190 : vector<8x128xf32>
    %192 = vector.extract_strided_slice %174 {offsets = [0, 256], sizes = [8, 128], strides = [1, 1]} : vector<8x384xf32> to vector<8x128xf32>
    %193 = vector.extract_strided_slice %175 {offsets = [0, 256], sizes = [8, 128], strides = [1, 1]} : vector<8x384xf32> to vector<8x128xf32>
    %194 = arith.mulf %191, %193 : vector<8x128xf32>
    %195 = arith.addf %192, %194 : vector<8x128xf32>
    %196 = math.tanh %195 : vector<8x128xf32>
    %197 = arith.mulf %183, %168 : vector<8x128xf32>
    %cst_48 = arith.constant 1.000000e+00 : f32
    %198 = vector.broadcast %cst_48 : f32 to vector<8x128xf32>
    %199 = arith.subf %198, %183 : vector<8x128xf32>
    %200 = arith.mulf %199, %196 : vector<8x128xf32>
    %201 = arith.addf %197, %200 : vector<8x128xf32>
    %202 = arith.index_cast %172 : i32 to index
    %c0_49 = arith.constant 0 : index
    %203 = vector.load %arg9[%202, %c0_49] : memref<64x128xf32, #tpu.memory_space<vmem>>, vector<8x128xf32>
    tpu.vector_store %arg9[%202, %c0_49], %201 {strides = array<i32>} : memref<64x128xf32, #tpu.memory_space<vmem>>, vector<8x128xf32>,
    %c6_i32 = arith.constant 6 : i32
    %c8_i32_50 = arith.constant 8 : i32
    %204 = arith.muli %c6_i32, %c8_i32_50 : i32
    %205 = tpu.assume_multiple %204, 8 : i32
    %206 = arith.index_cast %205 : i32 to index
    %c0_51 = arith.constant 0 : index
    %207 = vector.load %arg8[%206, %c0_51] : memref<64x384xf32, #tpu.memory_space<vmem>>, vector<8x384xf32>
    %cst_52 = arith.constant dense<0.000000e+00> : vector<8x384xf32>
    %208 = tpu.matmul %201, %4, %cst_52 {dimension_numbers = #tpu.dot_dimension_numbers<[1], [0], [0], [1], [0, 0, 1, 1], [], []>} : vector<8x128xf32>, vector<128x384xf32>, vector<8x384xf32> -> vector<8x384xf32>
    %209 = vector.extract_strided_slice %207 {offsets = [0, 0], sizes = [8, 128], strides = [1, 1]} : vector<8x384xf32> to vector<8x128xf32>
    %210 = vector.extract_strided_slice %208 {offsets = [0, 0], sizes = [8, 128], strides = [1, 1]} : vector<8x384xf32> to vector<8x128xf32>
    %211 = arith.addf %209, %210 : vector<8x128xf32>
    %212 = arith.negf %211 : vector<8x128xf32>
    %213 = math.exp %212 : vector<8x128xf32>
    %cst_53 = arith.constant 1.000000e+00 : f32
    %214 = vector.broadcast %cst_53 : f32 to vector<8x128xf32>
    %215 = arith.addf %214, %213 : vector<8x128xf32>
    %216 = arith.divf %214, %215 : vector<8x128xf32>
    %217 = vector.extract_strided_slice %207 {offsets = [0, 128], sizes = [8, 128], strides = [1, 1]} : vector<8x384xf32> to vector<8x128xf32>
    %218 = vector.extract_strided_slice %208 {offsets = [0, 128], sizes = [8, 128], strides = [1, 1]} : vector<8x384xf32> to vector<8x128xf32>
    %219 = arith.addf %217, %218 : vector<8x128xf32>
    %220 = arith.negf %219 : vector<8x128xf32>
    %221 = math.exp %220 : vector<8x128xf32>
    %cst_54 = arith.constant 1.000000e+00 : f32
    %222 = vector.broadcast %cst_54 : f32 to vector<8x128xf32>
    %223 = arith.addf %222, %221 : vector<8x128xf32>
    %224 = arith.divf %222, %223 : vector<8x128xf32>
    %225 = vector.extract_strided_slice %207 {offsets = [0, 256], sizes = [8, 128], strides = [1, 1]} : vector<8x384xf32> to vector<8x128xf32>
    %226 = vector.extract_strided_slice %208 {offsets = [0, 256], sizes = [8, 128], strides = [1, 1]} : vector<8x384xf32> to vector<8x128xf32>
    %227 = arith.mulf %224, %226 : vector<8x128xf32>
    %228 = arith.addf %225, %227 : vector<8x128xf32>
    %229 = math.tanh %228 : vector<8x128xf32>
    %230 = arith.mulf %216, %201 : vector<8x128xf32>
    %cst_55 = arith.constant 1.000000e+00 : f32
    %231 = vector.broadcast %cst_55 : f32 to vector<8x128xf32>
    %232 = arith.subf %231, %216 : vector<8x128xf32>
    %233 = arith.mulf %232, %229 : vector<8x128xf32>
    %234 = arith.addf %230, %233 : vector<8x128xf32>
    %235 = arith.index_cast %205 : i32 to index
    %c0_56 = arith.constant 0 : index
    %236 = vector.load %arg9[%235, %c0_56] : memref<64x128xf32, #tpu.memory_space<vmem>>, vector<8x128xf32>
    tpu.vector_store %arg9[%235, %c0_56], %234 {strides = array<i32>} : memref<64x128xf32, #tpu.memory_space<vmem>>, vector<8x128xf32>,
    %c7_i32 = arith.constant 7 : i32
    %c8_i32_57 = arith.constant 8 : i32
    %237 = arith.muli %c7_i32, %c8_i32_57 : i32
    %238 = tpu.assume_multiple %237, 8 : i32
    %239 = arith.index_cast %238 : i32 to index
    %c0_58 = arith.constant 0 : index
    %240 = vector.load %arg8[%239, %c0_58] : memref<64x384xf32, #tpu.memory_space<vmem>>, vector<8x384xf32>
    %cst_59 = arith.constant dense<0.000000e+00> : vector<8x384xf32>
    %241 = tpu.matmul %234, %4, %cst_59 {dimension_numbers = #tpu.dot_dimension_numbers<[1], [0], [0], [1], [0, 0, 1, 1], [], []>} : vector<8x128xf32>, vector<128x384xf32>, vector<8x384xf32> -> vector<8x384xf32>
    %242 = vector.extract_strided_slice %240 {offsets = [0, 0], sizes = [8, 128], strides = [1, 1]} : vector<8x384xf32> to vector<8x128xf32>
    %243 = vector.extract_strided_slice %241 {offsets = [0, 0], sizes = [8, 128], strides = [1, 1]} : vector<8x384xf32> to vector<8x128xf32>
    %244 = arith.addf %242, %243 : vector<8x128xf32>
    %245 = arith.negf %244 : vector<8x128xf32>
    %246 = math.exp %245 : vector<8x128xf32>
    %cst_60 = arith.constant 1.000000e+00 : f32
    %247 = vector.broadcast %cst_60 : f32 to vector<8x128xf32>
    %248 = arith.addf %247, %246 : vector<8x128xf32>
    %249 = arith.divf %247, %248 : vector<8x128xf32>
    %250 = vector.extract_strided_slice %240 {offsets = [0, 128], sizes = [8, 128], strides = [1, 1]} : vector<8x384xf32> to vector<8x128xf32>
    %251 = vector.extract_strided_slice %241 {offsets = [0, 128], sizes = [8, 128], strides = [1, 1]} : vector<8x384xf32> to vector<8x128xf32>
    %252 = arith.addf %250, %251 : vector<8x128xf32>
    %253 = arith.negf %252 : vector<8x128xf32>
    %254 = math.exp %253 : vector<8x128xf32>
    %cst_61 = arith.constant 1.000000e+00 : f32
    %255 = vector.broadcast %cst_61 : f32 to vector<8x128xf32>
    %256 = arith.addf %255, %254 : vector<8x128xf32>
    %257 = arith.divf %255, %256 : vector<8x128xf32>
    %258 = vector.extract_strided_slice %240 {offsets = [0, 256], sizes = [8, 128], strides = [1, 1]} : vector<8x384xf32> to vector<8x128xf32>
    %259 = vector.extract_strided_slice %241 {offsets = [0, 256], sizes = [8, 128], strides = [1, 1]} : vector<8x384xf32> to vector<8x128xf32>
    %260 = arith.mulf %257, %259 : vector<8x128xf32>
    %261 = arith.addf %258, %260 : vector<8x128xf32>
    %262 = math.tanh %261 : vector<8x128xf32>
    %263 = arith.mulf %249, %234 : vector<8x128xf32>
    %cst_62 = arith.constant 1.000000e+00 : f32
    %264 = vector.broadcast %cst_62 : f32 to vector<8x128xf32>
    %265 = arith.subf %264, %249 : vector<8x128xf32>
    %266 = arith.mulf %265, %262 : vector<8x128xf32>
    %267 = arith.addf %263, %266 : vector<8x128xf32>
    %268 = arith.index_cast %238 : i32 to index
    %c0_63 = arith.constant 0 : index
    %269 = vector.load %arg9[%268, %c0_63] : memref<64x128xf32, #tpu.memory_space<vmem>>, vector<8x128xf32>
    tpu.vector_store %arg9[%268, %c0_63], %267 {strides = array<i32>} : memref<64x128xf32, #tpu.memory_space<vmem>>, vector<8x128xf32>,
    %c8_i32_64 = arith.constant 8 : i32
    %c0_65 = arith.constant 0 : index
    %c0_66 = arith.constant 0 : index
    %270 = vector.load %arg7[%c0_65, %c0_66] : memref<8x128xf32, #tpu.memory_space<vmem>>, vector<8x128xf32>
    tpu.vector_store %arg7[%c0_65, %c0_66], %267 {strides = array<i32>} : memref<8x128xf32, #tpu.memory_space<vmem>>, vector<8x128xf32>,
    %c0_67 = arith.constant 0 : index
    %c0_68 = arith.constant 0 : index
    %271 = vector.load %arg9[%c0_67, %c0_68] : memref<64x128xf32, #tpu.memory_space<vmem>>, vector<64x128xf32>
    %c0_69 = arith.constant 0 : index
    %c0_70 = arith.constant 0 : index
    %272 = vector.load %arg5[%c0_69, %c0_70] : memref<128x128xf32, #tpu.memory_space<vmem>>, vector<128x128xf32>
    %cst_71 = arith.constant dense<0.000000e+00> : vector<64x128xf32>
    %273 = tpu.matmul %271, %272, %cst_71 {dimension_numbers = #tpu.dot_dimension_numbers<[1], [0], [0], [1], [0, 0, 1, 1], [], []>} : vector<64x128xf32>, vector<128x128xf32>, vector<64x128xf32> -> vector<64x128xf32>
    %274 = tpu.iota {dimensions = array<i32: 1>} : vector<64x128xi32>
    %c65_i32 = arith.constant 65 : i32
    %275 = vector.broadcast %c65_i32 : i32 to vector<64x128xi32>
    %276 = arith.cmpi slt, %274, %275 : vector<64x128xi32>
    %cst_72 = arith.constant -1.000000e+30 : f32
    %277 = vector.broadcast %cst_72 : f32 to vector<64x128xf32>
    %278 = arith.select %276, %273, %277 : vector<64x128xi1>, vector<64x128xf32>
    %cst_73 = arith.constant dense<0xFF800000> : vector<64xf32>
    %279 = vector.multi_reduction <maximumf>, %278, %cst_73 [1] : vector<64x128xf32> to vector<64xf32>
    %280 = vector.shape_cast %279 : vector<64xf32> to vector<64x1xf32>
    %281 = vector.broadcast %280 : vector<64x1xf32> to vector<64x128xf32>
    %282 = arith.subf %278, %281 : vector<64x128xf32>
    %283 = math.exp %282 : vector<64x128xf32>
    %cst_74 = arith.constant dense<0.000000e+00> : vector<64xf32>
    %284 = vector.multi_reduction <add>, %283, %cst_74 [1] : vector<64x128xf32> to vector<64xf32>
    %285 = vector.shape_cast %284 : vector<64xf32> to vector<64x1xf32>
    %286 = math.log %285 : vector<64x1xf32>
    %287 = vector.broadcast %286 : vector<64x1xf32> to vector<64x128xf32>
    %288 = arith.subf %282, %287 : vector<64x128xf32>
    %c0_75 = arith.constant 0 : index
    %c0_76 = arith.constant 0 : index
    %289 = vector.load %arg6[%c0_75, %c0_76] : memref<64x128xf32, #tpu.memory_space<vmem>>, vector<64x128xf32>
    tpu.vector_store %arg6[%c0_75, %c0_76], %288 {strides = array<i32>} : memref<64x128xf32, #tpu.memory_space<vmem>>, vector<64x128xf32>,
    return
  }
  func.func @transform_0(%arg0: i32) -> (i32, i32) {
    %c0_i32 = arith.constant 0 : i32
    %c0_i32_0 = arith.constant 0 : i32
    %c0_i32_1 = arith.constant 0 : i32
    return %c0_i32, %c0_i32_0 : i32, i32
  }
  func.func @transform_1(%arg0: i32) -> (i32, i32) {
    %c0_i32 = arith.constant 0 : i32
    %c0_i32_0 = arith.constant 0 : i32
    %c0_i32_1 = arith.constant 0 : i32
    return %c0_i32, %c0_i32_0 : i32, i32
  }
  func.func @transform_2(%arg0: i32) -> (i32, i32) {
    %c0_i32 = arith.constant 0 : i32
    %c0_i32_0 = arith.constant 0 : i32
    %c0_i32_1 = arith.constant 0 : i32
    return %c0_i32, %c0_i32_0 : i32, i32
  }
  func.func @transform_3(%arg0: i32) -> (i32, i32) {
    %c0_i32 = arith.constant 0 : i32
    %c0_i32_0 = arith.constant 0 : i32
    %c0_i32_1 = arith.constant 0 : i32
    return %c0_i32, %c0_i32_0 : i32, i32
  }
  func.func @transform_4(%arg0: i32) -> (i32, i32) {
    %c0_i32 = arith.constant 0 : i32
    %c0_i32_0 = arith.constant 0 : i32
    %c0_i32_1 = arith.constant 0 : i32
    return %c0_i32, %c0_i32_0 : i32, i32
  }
  func.func @transform_5(%arg0: i32) -> (i32, i32) {
    %c0_i32 = arith.constant 0 : i32
    %c0_i32_0 = arith.constant 0 : i32
    %c0_i32_1 = arith.constant 0 : i32
    return %c0_i32, %c0_i32_0 : i32, i32
  }
  func.func @transform_6(%arg0: i32) -> (i32, i32) {
    %c0_i32 = arith.constant 0 : i32
    %c0_i32_0 = arith.constant 0 : i32
    %c0_i32_1 = arith.constant 0 : i32
    return %c0_i32, %c0_i32_0 : i32, i32
  }
}

</mosaic_0001>

<llo_original>
// kernel: tpu_custom_call.1
$region0: #{tpu_custom_call.1}
  #allocation0 [shape = 'u32[]', space=smem, size = 0x4, offset = 0x4, fixed_abs, tag = 'smem constant byte address 0x4 - core index']
  #allocation1 [shape = 'u32[72,128]{1,0:T(1,128)}', space=vmem, size = 0x9000, scoped, tag = 'internal scratch']
  #allocation2 [shape = 'f32[64,384]{1,0:T(8,128)}', space=vmem, size = 0x18000, scoped, tag = 'scratch operand']
  #allocation3 [shape = 'f32[64,128]{1,0:T(8,128)}', space=vmem, size = 0x8000, scoped, tag = 'scratch operand']
  %s0 = inlined_call_operand.hbm [shape: f32[64,128], index: 0, kind: input, shape index: {}]
  %s1 = inlined_call_operand.hbm [shape: f32[8,128], index: 1, kind: input, shape index: {}]
  %s2 = inlined_call_operand.hbm [shape: f32[128,384], index: 2, kind: input, shape index: {}]
  %s3 = inlined_call_operand.hbm [shape: f32[128,384], index: 3, kind: input, shape index: {}]
  %s4 = inlined_call_operand.hbm [shape: f32[128,128], index: 4, kind: input, shape index: {}]
  %s5 = inlined_call_operand.hbm [shape: f32[64,128], index: 5, kind: output, shape index: {0}]
  %s6 = inlined_call_operand.hbm [shape: f32[8,128], index: 6, kind: output, shape index: {1}]
  %7 = xla_tuple %s5, %s6
  %s8 = sld [smem:[#allocation0]]
  $region58: #{tpu_custom_call.1} parent=0
    _
  %s10 = ssub.s32 1, %s8
  %s11 = scalar_select 0, %s10, %s8
  $region1: #{tpu_custom_call.1} parent=0
    #allocation4 [shape = 'u8[32768]{0}', space=vmem, size = 0x8000, scoped, tag = 'input window, operand 0, single buffered']
    #allocation5 [shape = 's32[1]{0}', space=sflag, size = 0x4, scoped, tag = 'scoped memory for tpu_custom_call.1']
    #allocation6 [shape = 's32[1]{0}', space=sflag, size = 0x4, scoped, tag = 'scoped memory for tpu_custom_call.1']
    #allocation7 [shape = 'u8[4096]{0}', space=vmem, size = 0x1000, scoped, tag = 'input window, operand 1, single buffered']
    #allocation8 [shape = 's32[1]{0}', space=sflag, size = 0x4, scoped, tag = 'scoped memory for tpu_custom_call.1']
    #allocation9 [shape = 'u8[196608]{0}', space=vmem, size = 0x30000, scoped, tag = 'input window, operand 2, single buffered']
    #allocation10 [shape = 'u8[196608]{0}', space=vmem, size = 0x30000, scoped, tag = 'input window, operand 3, single buffered']
    #allocation11 [shape = 's32[1]{0}', space=sflag, size = 0x4, scoped, tag = 'scoped memory for tpu_custom_call.1']
    #allocation12 [shape = 'u8[65536]{0}', space=vmem, size = 0x10000, scoped, tag = 'input window, operand 4, single buffered']
    #allocation13 [shape = 'u8[32768]{0}', space=vmem, size = 0x8000, scoped, tag = 'output window, operand 0, single buffered']
    #allocation14 [shape = 'u8[4096]{0}', space=vmem, size = 0x1000, scoped, tag = 'output window, operand 1, single buffered']
    #allocation15 [shape = 's32[1]{0}', space=sflag, size = 0x4, scoped, tag = 'scoped memory for tpu_custom_call.1']
    %12 = vsyncpa [#allocation5], 0
    %13 = vsyncpa [#allocation8], 0
    %14 = vsyncpa [#allocation11], 0
    %15 = vsyncpa [#allocation6], 0
    %16 = vsyncpa [#allocation15], 0
    // Predicated region
    $region2: #{tpu_custom_call.1} parent=1 // pred_check
      _
    $region3: #{tpu_custom_call.1} parent=1 // pred_check_branch
      %18 = sbr.rel (0) target = $region5
    $region4: #{tpu_custom_call.1} parent=1 // pred_region
      %20 = vsyncadd [#allocation5], 0
      %s21 = sshll.u32 %s0, 4
      %s22 = int_to_ptr.hbm [resolvable:$true] %s21
      %s23 = sshll.u32 [#allocation4], 4
      %s24 = int_to_ptr.vmem [resolvable:$true] %s23
      %29 = dma.hbm_to_vmem [thread:$0]  %s22, 1024, %s24, [#allocation5], 128, 128, 8
    $region5: #{tpu_custom_call.1} parent=1 // pred_fallthru
      _
    // Predicated region
    $region6: #{tpu_custom_call.1} parent=1 // pred_check
      _
    $region7: #{tpu_custom_call.1} parent=1 // pred_check_branch
      %31 = sbr.rel (0) target = $region9
    $region8: #{tpu_custom_call.1} parent=1 // pred_region
      %33 = vsyncadd [#allocation8], 0
      %s35 = sshll.u32 %s1, 4
      %s36 = int_to_ptr.hbm [resolvable:$true] %s35
      %s37 = sshll.u32 [#allocation7], 4
      %s38 = int_to_ptr.vmem [resolvable:$true] %s37
      %40 = dma.hbm_to_vmem [thread:$0]  %s36, 128, %s38, [#allocation8]
    $region9: #{tpu_custom_call.1} parent=1 // pred_fallthru
      _
    // Predicated region
    $region10: #{tpu_custom_call.1} parent=1 // pred_check
      _
    $region11: #{tpu_custom_call.1} parent=1 // pred_check_branch
      %42 = sbr.rel (0) target = $region13
    $region12: #{tpu_custom_call.1} parent=1 // pred_region
      %44 = vsyncadd [#allocation8], 0
      %s45 = sshll.u32 %s2, 4
      %s46 = int_to_ptr.hbm [resolvable:$true] %s45
      %s47 = sshll.u32 [#allocation9], 4
      %s48 = int_to_ptr.vmem [resolvable:$true] %s47
      %53 = dma.hbm_to_vmem [thread:$0]  %s46, 6144, %s48, [#allocation8], 384, 384, 24
    $region13: #{tpu_custom_call.1} parent=1 // pred_fallthru
      _
    // Predicated region
    $region14: #{tpu_custom_call.1} parent=1 // pred_check
      _
    $region15: #{tpu_custom_call.1} parent=1 // pred_check_branch
      %55 = sbr.rel (0) target = $region17
    $region16: #{tpu_custom_call.1} parent=1 // pred_region
      %57 = vsyncadd [#allocation11], 0
      %s58 = sshll.u32 %s3, 4
      %s59 = int_to_ptr.hbm [resolvable:$true] %s58
      %s60 = sshll.u32 [#allocation10], 4
      %s61 = int_to_ptr.vmem [resolvable:$true] %s60
      %66 = dma.hbm_to_vmem [thread:$0]  %s59, 6144, %s61, [#allocation11], 384, 384, 24
    $region17: #{tpu_custom_call.1} parent=1 // pred_fallthru
      _
    // Predicated region
    $region18: #{tpu_custom_call.1} parent=1 // pred_check
      _
    $region19: #{tpu_custom_call.1} parent=1 // pred_check_branch
      %68 = sbr.rel (0) target = $region21
    $region20: #{tpu_custom_call.1} parent=1 // pred_region
      %70 = vsyncadd [#allocation11], 0
      %s71 = sshll.u32 %s4, 4
      %s72 = int_to_ptr.hbm [resolvable:$true] %s71
      %s73 = sshll.u32 [#allocation12], 4
      %s74 = int_to_ptr.vmem [resolvable:$true] %s73
      %79 = dma.hbm_to_vmem [thread:$0]  %s72, 2048, %s74, [#allocation11], 128, 128, 8
    $region21: #{tpu_custom_call.1} parent=1 // pred_fallthru
      _
    // Predicated region
    $region22: #{tpu_custom_call.1} parent=1 // pred_check
      _
    $region23: #{tpu_custom_call.1} parent=1 // pred_check_branch
      %81 = sbr.rel (0) target = $region25
    $region24: #{tpu_custom_call.1} parent=1 // pred_region
      %83 = dma.done [#allocation5], 1024
    $region25: #{tpu_custom_call.1} parent=1 // pred_fallthru
      _
    // Predicated region
    $region26: #{tpu_custom_call.1} parent=1 // pred_check
      _
    $region27: #{tpu_custom_call.1} parent=1 // pred_check_branch
      %85 = sbr.rel (0) target = $region29
    $region28: #{tpu_custom_call.1} parent=1 // pred_region
      %87 = dma.done [#allocation8], 128
    $region29: #{tpu_custom_call.1} parent=1 // pred_fallthru
      _
    // Predicated region
    $region30: #{tpu_custom_call.1} parent=1 // pred_check
      _
    $region31: #{tpu_custom_call.1} parent=1 // pred_check_branch
      %89 = sbr.rel (0) target = $region33
    $region32: #{tpu_custom_call.1} parent=1 // pred_region
      %91 = dma.done [#allocation8], 6144
    $region33: #{tpu_custom_call.1} parent=1 // pred_fallthru
      _
    // Predicated region
    $region34: #{tpu_custom_call.1} parent=1 // pred_check
      _
    $region35: #{tpu_custom_call.1} parent=1 // pred_check_branch
      %93 = sbr.rel (0) target = $region37
    $region36: #{tpu_custom_call.1} parent=1 // pred_region
      %95 = dma.done [#allocation11], 6144
    $region37: #{tpu_custom_call.1} parent=1 // pred_fallthru
      _
    // Predicated region
    $region38: #{tpu_custom_call.1} parent=1 // pred_check
      _
    $region39: #{tpu_custom_call.1} parent=1 // pred_check_branch
      %97 = sbr.rel (0) target = $region41
    $region40: #{tpu_custom_call.1} parent=1 // pred_region
      %99 = dma.done [#allocation11], 2048
    $region41: #{tpu_custom_call.1} parent=1 // pred_fallthru
      _
    %v100 = vld [vmem:[#allocation4] sm:$0xff]
    %v101 = vld [vmem:[#allocation4 + $0x8] sm:$0xff]
    %v102 = vld [vmem:[#allocation4 + $0x10] sm:$0xff]
    %v103 = vld [vmem:[#allocation4 + $0x18] sm:$0xff]
    %v104 = vld [vmem:[#allocation4 + $0x20] sm:$0xff]
    %v105 = vld [vmem:[#allocation4 + $0x28] sm:$0xff]
    %v106 = vld [vmem:[#allocation4 + $0x30] sm:$0xff]
    %v107 = vld [vmem:[#allocation4 + $0x38] sm:$0xff]
    %v108 = vld [vmem:[#allocation9] sm:$0xff]
    %v109 = vld [vmem:[#allocation9 + $0x8] sm:$0xff]
    %v110 = vld [vmem:[#allocation9 + $0x10] sm:$0xff]
    %v111 = vld [vmem:[#allocation9 + $0x18] sm:$0xff]
    %v112 = vld [vmem:[#allocation9 + $0x20] sm:$0xff]
    %v113 = vld [vmem:[#allocation9 + $0x28] sm:$0xff]
    %v114 = vld [vmem:[#allocation9 + $0x30] sm:$0xff]
    %v115 = vld [vmem:[#allocation9 + $0x38] sm:$0xff]
    %v116 = vld [vmem:[#allocation9 + $0x40] sm:$0xff]
    %v117 = vld [vmem:[#allocation9 + $0x48] sm:$0xff]
    %v118 = vld [vmem:[#allocation9 + $0x50] sm:$0xff]
    %v119 = vld [vmem:[#allocation9 + $0x58] sm:$0xff]
    %v120 = vld [vmem:[#allocation9 + $0x60] sm:$0xff]
    %v121 = vld [vmem:[#allocation9 + $0x68] sm:$0xff]
    %v122 = vld [vmem:[#allocation9 + $0x70] sm:$0xff]
    %v123 = vld [vmem:[#allocation9 + $0x78] sm:$0xff]
    %v124 = vld [vmem:[#allocation9 + $0x80] sm:$0xff]
    %v125 = vld [vmem:[#allocation9 + $0x88] sm:$0xff]
    %v126 = vld [vmem:[#allocation9 + $0x90] sm:$0xff]
    %v127 = vld [vmem:[#allocation9 + $0x98] sm:$0xff]
    %v128 = vld [vmem:[#allocation9 + $0xa0] sm:$0xff]
    %v129 = vld [vmem:[#allocation9 + $0xa8] sm:$0xff]
    %v130 = vld [vmem:[#allocation9 + $0xb0] sm:$0xff]
    %v131 = vld [vmem:[#allocation9 + $0xb8] sm:$0xff]
    %v132 = vld [vmem:[#allocation9 + $0xc0] sm:$0xff]
    %v133 = vld [vmem:[#allocation9 + $0xc8] sm:$0xff]
    %v134 = vld [vmem:[#allocation9 + $0xd0] sm:$0xff]
    %v135 = vld [vmem:[#allocation9 + $0xd8] sm:$0xff]
    %v136 = vld [vmem:[#allocation9 + $0xe0] sm:$0xff]
    %v137 = vld [vmem:[#allocation9 + $0xe8] sm:$0xff]
    %v138 = vld [vmem:[#allocation9 + $0xf0] sm:$0xff]
    %v139 = vld [vmem:[#allocation9 + $0xf8] sm:$0xff]
    %v140 = vld [vmem:[#allocation9 + $0x100] sm:$0xff]
    %v141 = vld [vmem:[#allocation9 + $0x108] sm:$0xff]
    %v142 = vld [vmem:[#allocation9 + $0x110] sm:$0xff]
    %v143 = vld [vmem:[#allocation9 + $0x118] sm:$0xff]
    %v144 = vld [vmem:[#allocation9 + $0x120] sm:$0xff]
    %v145 = vld [vmem:[#allocation9 + $0x128] sm:$0xff]
    %v146 = vld [vmem:[#allocation9 + $0x130] sm:$0xff]
    %v147 = vld [vmem:[#allocation9 + $0x138] sm:$0xff]
    %v148 = vld [vmem:[#allocation9 + $0x140] sm:$0xff]
    %v149 = vld [vmem:[#allocation9 + $0x148] sm:$0xff]
    %v150 = vld [vmem:[#allocation9 + $0x150] sm:$0xff]
    %v151 = vld [vmem:[#allocation9 + $0x158] sm:$0xff]
    %v152 = vld [vmem:[#allocation9 + $0x160] sm:$0xff]
    %v153 = vld [vmem:[#allocation9 + $0x168] sm:$0xff]
    %v154 = vld [vmem:[#allocation9 + $0x170] sm:$0xff]
    %v155 = vld [vmem:[#allocation9 + $0x178] sm:$0xff]
    %156 = vmatpush.msra.mxu0 %v153
    %157 = vmatpush.msra.mxu0 %v150
    %158 = vmatpush.msra.mxu0 %v147
    %159 = vmatpush.msra.mxu0 %v144
    %160 = vmatpush.msra.mxu0 %v141
    %161 = vmatpush.msra.mxu0 %v138
    %162 = vmatpush.msra.mxu0 %v135
    %163 = vmatpush.msra.mxu0 %v132
    %164 = vmatpush.msra.mxu0 %v129
    %165 = vmatpush.msra.mxu0 %v126
    %166 = vmatpush.msra.mxu0 %v123
    %167 = vmatpush.msra.mxu0 %v120
    %168 = vmatpush.msra.mxu0 %v117
    %169 = vmatpush.msra.mxu0 %v114
    %170 = vmatpush.msra.mxu0 %v111
    %171 = vmatpush.msra.mxu0 %v108
    %172 = vmatmul.f32.gmra.mxu0 %v100
    %v173 = vpop.f32.mrf.mxu0
    %v174 = vadd.f32 0.0, %v173
    %175 = vmatmul.f32.gmra.mxu0 %v101
    %v176 = vpop.f32.mrf.mxu0
    %v177 = vadd.f32 0.0, %v176
    %178 = vmatmul.f32.gmra.mxu0 %v102
    %v179 = vpop.f32.mrf.mxu0
    %v180 = vadd.f32 0.0, %v179
    %181 = vmatmul.f32.gmra.mxu0 %v103
    %v182 = vpop.f32.mrf.mxu0
    %v183 = vadd.f32 0.0, %v182
    %184 = vmatmul.f32.gmra.mxu0 %v104
    %v185 = vpop.f32.mrf.mxu0
    %v186 = vadd.f32 0.0, %v185
    %187 = vmatmul.f32.gmra.mxu0 %v105
    %v188 = vpop.f32.mrf.mxu0
    %v189 = vadd.f32 0.0, %v188
    %190 = vmatmul.f32.gmra.mxu0 %v106
    %v191 = vpop.f32.mrf.mxu0
    %v192 = vadd.f32 0.0, %v191
    %193 = vmatmul.f32.gmra.mxu0 %v107
    %v194 = vpop.f32.mrf.mxu0
    %v195 = vadd.f32 0.0, %v194
    %196 = vdwg.mxu0
    %197 = vmatpush.msra.mxu0 %v154
    %198 = vmatpush.msra.mxu0 %v151
    %199 = vmatpush.msra.mxu0 %v148
    %200 = vmatpush.msra.mxu0 %v145
    %201 = vmatpush.msra.mxu0 %v142
    %202 = vmatpush.msra.mxu0 %v139
    %203 = vmatpush.msra.mxu0 %v136
    %204 = vmatpush.msra.mxu0 %v133
    %205 = vmatpush.msra.mxu0 %v130
    %206 = vmatpush.msra.mxu0 %v127
    %207 = vmatpush.msra.mxu0 %v124
    %208 = vmatpush.msra.mxu0 %v121
    %209 = vmatpush.msra.mxu0 %v118
    %210 = vmatpush.msra.mxu0 %v115
    %211 = vmatpush.msra.mxu0 %v112
    %212 = vmatpush.msra.mxu0 %v109
    %213 = vmatmul.f32.gmra.mxu0 %v100
    %v214 = vpop.f32.mrf.mxu0
    %v215 = vadd.f32 0.0, %v214
    %216 = vmatmul.f32.gmra.mxu0 %v101
    %v217 = vpop.f32.mrf.mxu0
    %v218 = vadd.f32 0.0, %v217
    %219 = vmatmul.f32.gmra.mxu0 %v102
    %v220 = vpop.f32.mrf.mxu0
    %v221 = vadd.f32 0.0, %v220
    %222 = vmatmul.f32.gmra.mxu0 %v103
    %v223 = vpop.f32.mrf.mxu0
    %v224 = vadd.f32 0.0, %v223
    %225 = vmatmul.f32.gmra.mxu0 %v104
    %v226 = vpop.f32.mrf.mxu0
    %v227 = vadd.f32 0.0, %v226
    %228 = vmatmul.f32.gmra.mxu0 %v105
    %v229 = vpop.f32.mrf.mxu0
    %v230 = vadd.f32 0.0, %v229
    %231 = vmatmul.f32.gmra.mxu0 %v106
    %v232 = vpop.f32.mrf.mxu0
    %v233 = vadd.f32 0.0, %v232
    %234 = vmatmul.f32.gmra.mxu0 %v107
    %v235 = vpop.f32.mrf.mxu0
    %v236 = vadd.f32 0.0, %v235
    %237 = vdwg.mxu0
    %238 = vmatpush.msra.mxu0 %v155
    %239 = vmatpush.msra.mxu0 %v152
    %240 = vmatpush.msra.mxu0 %v149
    %241 = vmatpush.msra.mxu0 %v146
    %242 = vmatpush.msra.mxu0 %v143
    %243 = vmatpush.msra.mxu0 %v140
    %244 = vmatpush.msra.mxu0 %v137
    %245 = vmatpush.msra.mxu0 %v134
    %246 = vmatpush.msra.mxu0 %v131
    %247 = vmatpush.msra.mxu0 %v128
    %248 = vmatpush.msra.mxu0 %v125
    %249 = vmatpush.msra.mxu0 %v122
    %250 = vmatpush.msra.mxu0 %v119
    %251 = vmatpush.msra.mxu0 %v116
    %252 = vmatpush.msra.mxu0 %v113
    %253 = vmatpush.msra.mxu0 %v110
    %254 = vmatmul.f32.gmra.mxu0 %v100
    %v255 = vpop.f32.mrf.mxu0
    %v256 = vadd.f32 0.0, %v255
    %257 = vmatmul.f32.gmra.mxu0 %v101
    %v258 = vpop.f32.mrf.mxu0
    %v259 = vadd.f32 0.0, %v258
    %260 = vmatmul.f32.gmra.mxu0 %v102
    %v261 = vpop.f32.mrf.mxu0
    %v262 = vadd.f32 0.0, %v261
    %263 = vmatmul.f32.gmra.mxu0 %v103
    %v264 = vpop.f32.mrf.mxu0
    %v265 = vadd.f32 0.0, %v264
    %266 = vmatmul.f32.gmra.mxu0 %v104
    %v267 = vpop.f32.mrf.mxu0
    %v268 = vadd.f32 0.0, %v267
    %269 = vmatmul.f32.gmra.mxu0 %v105
    %v270 = vpop.f32.mrf.mxu0
    %v271 = vadd.f32 0.0, %v270
    %272 = vmatmul.f32.gmra.mxu0 %v106
    %v273 = vpop.f32.mrf.mxu0
    %v274 = vadd.f32 0.0, %v273
    %275 = vmatmul.f32.gmra.mxu0 %v107
    %v276 = vpop.f32.mrf.mxu0
    %v277 = vadd.f32 0.0, %v276
    %278 = vdwg.mxu0
    %279 = vst [vmem:[#allocation2] sm:$0xff] %v174
    %280 = vst [vmem:[#allocation2 + $0x8] sm:$0xff] %v215
    %281 = vst [vmem:[#allocation2 + $0x10] sm:$0xff] %v256
    %282 = vst [vmem:[#allocation2 + $0x18] sm:$0xff] %v177
    %283 = vst [vmem:[#allocation2 + $0x20] sm:$0xff] %v218
    %284 = vst [vmem:[#allocation2 + $0x28] sm:$0xff] %v259
    %285 = vst [vmem:[#allocation2 + $0x30] sm:$0xff] %v180
    %286 = vst [vmem:[#allocation2 + $0x38] sm:$0xff] %v221
    %287 = vst [vmem:[#allocation2 + $0x40] sm:$0xff] %v262
    %288 = vst [vmem:[#allocation2 + $0x48] sm:$0xff] %v183
    %289 = vst [vmem:[#allocation2 + $0x50] sm:$0xff] %v224
    %290 = vst [vmem:[#allocation2 + $0x58] sm:$0xff] %v265
    %291 = vst [vmem:[#allocation2 + $0x60] sm:$0xff] %v186
    %292 = vst [vmem:[#allocation2 + $0x68] sm:$0xff] %v227
    %293 = vst [vmem:[#allocation2 + $0x70] sm:$0xff] %v268
    %294 = vst [vmem:[#allocation2 + $0x78] sm:$0xff] %v189
    %295 = vst [vmem:[#allocation2 + $0x80] sm:$0xff] %v230
    %296 = vst [vmem:[#allocation2 + $0x88] sm:$0xff] %v271
    %297 = vst [vmem:[#allocation2 + $0x90] sm:$0xff] %v192
    %298 = vst [vmem:[#allocation2 + $0x98] sm:$0xff] %v233
    %299 = vst [vmem:[#allocation2 + $0xa0] sm:$0xff] %v274
    %300 = vst [vmem:[#allocation2 + $0xa8] sm:$0xff] %v195
    %301 = vst [vmem:[#allocation2 + $0xb0] sm:$0xff] %v236
    %302 = vst [vmem:[#allocation2 + $0xb8] sm:$0xff] %v277
    %v303 = vld [vmem:[#allocation10] sm:$0xff]
    %v304 = vld [vmem:[#allocation10 + $0x8] sm:$0xff]
    %v305 = vld [vmem:[#allocation10 + $0x10] sm:$0xff]
    %v306 = vld [vmem:[#allocation10 + $0x18] sm:$0xff]
    %v307 = vld [vmem:[#allocation10 + $0x20] sm:$0xff]
    %v308 = vld [vmem:[#allocation10 + $0x28] sm:$0xff]
    %v309 = vld [vmem:[#allocation10 + $0x30] sm:$0xff]
    %v310 = vld [vmem:[#allocation10 + $0x38] sm:$0xff]
    %v311 = vld [vmem:[#allocation10 + $0x40] sm:$0xff]
    %v312 = vld [vmem:[#allocation10 + $0x48] sm:$0xff]
    %v313 = vld [vmem:[#allocation10 + $0x50] sm:$0xff]
    %v314 = vld [vmem:[#allocation10 + $0x58] sm:$0xff]
    %v315 = vld [vmem:[#allocation10 + $0x60] sm:$0xff]
    %v316 = vld [vmem:[#allocation10 + $0x68] sm:$0xff]
    %v317 = vld [vmem:[#allocation10 + $0x70] sm:$0xff]
    %v318 = vld [vmem:[#allocation10 + $0x78] sm:$0xff]
    %v319 = vld [vmem:[#allocation10 + $0x80] sm:$0xff]
    %v320 = vld [vmem:[#allocation10 + $0x88] sm:$0xff]
    %v321 = vld [vmem:[#allocation10 + $0x90] sm:$0xff]
    %v322 = vld [vmem:[#allocation10 + $0x98] sm:$0xff]
    %v323 = vld [vmem:[#allocation10 + $0xa0] sm:$0xff]
    %v324 = vld [vmem:[#allocation10 + $0xa8] sm:$0xff]
    %v325 = vld [vmem:[#allocation10 + $0xb0] sm:$0xff]
    %v326 = vld [vmem:[#allocation10 + $0xb8] sm:$0xff]
    %v327 = vld [vmem:[#allocation10 + $0xc0] sm:$0xff]
    %v328 = vld [vmem:[#allocation10 + $0xc8] sm:$0xff]
    %v329 = vld [vmem:[#allocation10 + $0xd0] sm:$0xff]
    %v330 = vld [vmem:[#allocation10 + $0xd8] sm:$0xff]
    %v331 = vld [vmem:[#allocation10 + $0xe0] sm:$0xff]
    %v332 = vld [vmem:[#allocation10 + $0xe8] sm:$0xff]
    %v333 = vld [vmem:[#allocation10 + $0xf0] sm:$0xff]
    %v334 = vld [vmem:[#allocation10 + $0xf8] sm:$0xff]
    %v335 = vld [vmem:[#allocation10 + $0x100] sm:$0xff]
    %v336 = vld [vmem:[#allocation10 + $0x108] sm:$0xff]
    %v337 = vld [vmem:[#allocation10 + $0x110] sm:$0xff]
    %v338 = vld [vmem:[#allocation10 + $0x118] sm:$0xff]
    %v339 = vld [vmem:[#allocation10 + $0x120] sm:$0xff]
    %v340 = vld [vmem:[#allocation10 + $0x128] sm:$0xff]
    %v341 = vld [vmem:[#allocation10 + $0x130] sm:$0xff]
    %v342 = vld [vmem:[#allocation10 + $0x138] sm:$0xff]
    %v343 = vld [vmem:[#allocation10 + $0x140] sm:$0xff]
    %v344 = vld [vmem:[#allocation10 + $0x148] sm:$0xff]
    %v345 = vld [vmem:[#allocation10 + $0x150] sm:$0xff]
    %v346 = vld [vmem:[#allocation10 + $0x158] sm:$0xff]
    %v347 = vld [vmem:[#allocation10 + $0x160] sm:$0xff]
    %v348 = vld [vmem:[#allocation10 + $0x168] sm:$0xff]
    %v349 = vld [vmem:[#allocation10 + $0x170] sm:$0xff]
    %v350 = vld [vmem:[#allocation10 + $0x178] sm:$0xff]
    %v351 = vld [vmem:[#allocation7] sm:$0xff]
    %s352 = smul.u32 0, 3
    %s353 = smul.addr %s352, 8
    %s354 = scalar_lea.vmem [#allocation2], %s353
    %v355 = vld [vmem:[%s354] sm:$0xff]
    %v356 = vld [vmem:[%s354 + $0x8] sm:$0xff]
    %v357 = vld [vmem:[%s354 + $0x10] sm:$0xff]
    %358 = vmatpush.msra.mxu0 %v348
    %359 = vmatpush.msra.mxu0 %v345
    %360 = vmatpush.msra.mxu0 %v342
    %361 = vmatpush.msra.mxu0 %v339
    %362 = vmatpush.msra.mxu0 %v336
    %363 = vmatpush.msra.mxu0 %v333
    %364 = vmatpush.msra.mxu0 %v330
    %365 = vmatpush.msra.mxu0 %v327
    %366 = vmatpush.msra.mxu0 %v324
    %367 = vmatpush.msra.mxu0 %v321
    %368 = vmatpush.msra.mxu0 %v318
    %369 = vmatpush.msra.mxu0 %v315
    %370 = vmatpush.msra.mxu0 %v312
    %371 = vmatpush.msra.mxu0 %v309
    %372 = vmatpush.msra.mxu0 %v306
    %373 = vmatpush.msra.mxu0 %v303
    %374 = vmatmul.f32.gmra.mxu0 %v351
    %v375 = vpop.f32.mrf.mxu0
    %v376 = vadd.f32 0.0, %v375
    %377 = vdwg.mxu0
    %378 = vmatpush.msra.mxu0 %v349
    %379 = vmatpush.msra.mxu0 %v346
    %380 = vmatpush.msra.mxu0 %v343
    %381 = vmatpush.msra.mxu0 %v340
    %382 = vmatpush.msra.mxu0 %v337
    %383 = vmatpush.msra.mxu0 %v334
    %384 = vmatpush.msra.mxu0 %v331
    %385 = vmatpush.msra.mxu0 %v328
    %386 = vmatpush.msra.mxu0 %v325
    %387 = vmatpush.msra.mxu0 %v322
    %388 = vmatpush.msra.mxu0 %v319
    %389 = vmatpush.msra.mxu0 %v316
    %390 = vmatpush.msra.mxu0 %v313
    %391 = vmatpush.msra.mxu0 %v310
    %392 = vmatpush.msra.mxu0 %v307
    %393 = vmatpush.msra.mxu0 %v304
    %394 = vmatmul.f32.gmra.mxu0 %v351
    %v395 = vpop.f32.mrf.mxu0
    %v396 = vadd.f32 0.0, %v395
    %397 = vdwg.mxu0
    %398 = vmatpush.msra.mxu0 %v350
    %399 = vmatpush.msra.mxu0 %v347
    %400 = vmatpush.msra.mxu0 %v344
    %401 = vmatpush.msra.mxu0 %v341
    %402 = vmatpush.msra.mxu0 %v338
    %403 = vmatpush.msra.mxu0 %v335
    %404 = vmatpush.msra.mxu0 %v332
    %405 = vmatpush.msra.mxu0 %v329
    %406 = vmatpush.msra.mxu0 %v326
    %407 = vmatpush.msra.mxu0 %v323
    %408 = vmatpush.msra.mxu0 %v320
    %409 = vmatpush.msra.mxu0 %v317
    %410 = vmatpush.msra.mxu0 %v314
    %411 = vmatpush.msra.mxu0 %v311
    %412 = vmatpush.msra.mxu0 %v308
    %413 = vmatpush.msra.mxu0 %v305
    %414 = vmatmul.f32.gmra.mxu0 %v351
    %v415 = vpop.f32.mrf.mxu0
    %v416 = vadd.f32 0.0, %v415
    %417 = vdwg.mxu0
    %v418 = vadd.f32 %v355, %v376
    %v419 = vxor.u32 %v418, 2147483648
    %v420 = vmul.f32 %v419, 1.442695
    %v421 = vpow.pop %v420
    %v422 = vadd.f32 %v421, 1.0
    %v423 = vrcp.pop %v422
    %v424 = vmul.f32 %v422, %v423
    %v425 = vsub.f32 1.0, %v424
    %v426 = vmul.f32 %v423, %v425
    %v427 = vadd.f32 %v423, %v426
    %vm428 = vweird.f32 %v422
    %vm429 = vweird.f32 %v423
    %vm430 = vmor %vm428, %vm429
    %v431 = vsel %vm430, %v423, %v427
    %v432 = vand.u32 2147483647, %v422
    %vm433 = vcmp.eq.f32.partialorder %v432, 8.507059e+37
    %v434 = vand.u32 %v422, 2147483648
    %v435 = vor.u32 1.1754944e-38, %v434
    %v436 = vsel %vm433, %v435, %v431
    %v437 = vmul.f32 1.0, %v436
    %v438 = vadd.f32 %v356, %v396
    %v439 = vxor.u32 %v438, 2147483648
    %v440 = vmul.f32 %v439, 1.442695
    %v441 = vpow.pop %v440
    %v442 = vadd.f32 %v441, 1.0
    %v443 = vrcp.pop %v442
    %v444 = vmul.f32 %v442, %v443
    %v445 = vsub.f32 1.0, %v444
    %v446 = vmul.f32 %v443, %v445
    %v447 = vadd.f32 %v443, %v446
    %vm448 = vweird.f32 %v442
    %vm449 = vweird.f32 %v443
    %vm450 = vmor %vm448, %vm449
    %v451 = vsel %vm450, %v443, %v447
    %v452 = vand.u32 2147483647, %v442
    %vm453 = vcmp.eq.f32.partialorder %v452, 8.507059e+37
    %v454 = vand.u32 %v442, 2147483648
    %v455 = vor.u32 1.1754944e-38, %v454
    %v456 = vsel %vm453, %v455, %v451
    %v457 = vmul.f32 1.0, %v456
    %v458 = vmul.f32 %v457, %v416
    %v459 = vadd.f32 %v357, %v458
    %v460 = vtanh.pop %v459
    %v461 = vmul.f32 %v437, %v351
    %v462 = vsub.f32 1.0, %v437
    %v463 = vmul.f32 %v462, %v460
    %v464 = vadd.f32 %v461, %v463
    %465 = vst [vmem:[#allocation3] sm:$0xff] %v464
    %s466 = smul.u32 1, 3
    %s467 = smul.addr %s466, 8
    %s468 = scalar_lea.vmem [#allocation2], %s467
    %v469 = vld [vmem:[%s468] sm:$0xff]
    %v470 = vld [vmem:[%s468 + $0x8] sm:$0xff]
    %v471 = vld [vmem:[%s468 + $0x10] sm:$0xff]
    %472 = vmatpush.msra.mxu0 %v348
    %473 = vmatpush.msra.mxu0 %v345
    %474 = vmatpush.msra.mxu0 %v342
    %475 = vmatpush.msra.mxu0 %v339
    %476 = vmatpush.msra.mxu0 %v336
    %477 = vmatpush.msra.mxu0 %v333
    %478 = vmatpush.msra.mxu0 %v330
    %479 = vmatpush.msra.mxu0 %v327
    %480 = vmatpush.msra.mxu0 %v324
    %481 = vmatpush.msra.mxu0 %v321
    %482 = vmatpush.msra.mxu0 %v318
    %483 = vmatpush.msra.mxu0 %v315
    %484 = vmatpush.msra.mxu0 %v312
    %485 = vmatpush.msra.mxu0 %v309
    %486 = vmatpush.msra.mxu0 %v306
    %487 = vmatpush.msra.mxu0 %v303
    %488 = vmatmul.f32.gmra.mxu0 %v464
    %v489 = vpop.f32.mrf.mxu0
    %v490 = vadd.f32 0.0, %v489
    %491 = vdwg.mxu0
    %492 = vmatpush.msra.mxu0 %v349
    %493 = vmatpush.msra.mxu0 %v346
    %494 = vmatpush.msra.mxu0 %v343
    %495 = vmatpush.msra.mxu0 %v340
    %496 = vmatpush.msra.mxu0 %v337
    %497 = vmatpush.msra.mxu0 %v334
    %498 = vmatpush.msra.mxu0 %v331
    %499 = vmatpush.msra.mxu0 %v328
    %500 = vmatpush.msra.mxu0 %v325
    %501 = vmatpush.msra.mxu0 %v322
    %502 = vmatpush.msra.mxu0 %v319
    %503 = vmatpush.msra.mxu0 %v316
    %504 = vmatpush.msra.mxu0 %v313
    %505 = vmatpush.msra.mxu0 %v310
    %506 = vmatpush.msra.mxu0 %v307
    %507 = vmatpush.msra.mxu0 %v304
    %508 = vmatmul.f32.gmra.mxu0 %v464
    %v509 = vpop.f32.mrf.mxu0
    %v510 = vadd.f32 0.0, %v509
    %511 = vdwg.mxu0
    %512 = vmatpush.msra.mxu0 %v350
    %513 = vmatpush.msra.mxu0 %v347
    %514 = vmatpush.msra.mxu0 %v344
    %515 = vmatpush.msra.mxu0 %v341
    %516 = vmatpush.msra.mxu0 %v338
    %517 = vmatpush.msra.mxu0 %v335
    %518 = vmatpush.msra.mxu0 %v332
    %519 = vmatpush.msra.mxu0 %v329
    %520 = vmatpush.msra.mxu0 %v326
    %521 = vmatpush.msra.mxu0 %v323
    %522 = vmatpush.msra.mxu0 %v320
    %523 = vmatpush.msra.mxu0 %v317
    %524 = vmatpush.msra.mxu0 %v314
    %525 = vmatpush.msra.mxu0 %v311
    %526 = vmatpush.msra.mxu0 %v308
    %527 = vmatpush.msra.mxu0 %v305
    %528 = vmatmul.f32.gmra.mxu0 %v464
    %v529 = vpop.f32.mrf.mxu0
    %v530 = vadd.f32 0.0, %v529
    %531 = vdwg.mxu0
    %v532 = vadd.f32 %v469, %v490
    %v533 = vxor.u32 %v532, 2147483648
    %v534 = vmul.f32 %v533, 1.442695
    %v535 = vpow.pop %v534
    %v536 = vadd.f32 %v535, 1.0
    %v537 = vrcp.pop %v536
    %v538 = vmul.f32 %v536, %v537
    %v539 = vsub.f32 1.0, %v538
    %v540 = vmul.f32 %v537, %v539
    %v541 = vadd.f32 %v537, %v540
    %vm542 = vweird.f32 %v536
    %vm543 = vweird.f32 %v537
    %vm544 = vmor %vm542, %vm543
    %v545 = vsel %vm544, %v537, %v541
    %v546 = vand.u32 2147483647, %v536
    %vm547 = vcmp.eq.f32.partialorder %v546, 8.507059e+37
    %v548 = vand.u32 %v536, 2147483648
    %v549 = vor.u32 1.1754944e-38, %v548
    %v550 = vsel %vm547, %v549, %v545
    %v551 = vmul.f32 1.0, %v550
    %v552 = vadd.f32 %v470, %v510
    %v553 = vxor.u32 %v552, 2147483648
    %v554 = vmul.f32 %v553, 1.442695
    %v555 = vpow.pop %v554
    %v556 = vadd.f32 %v555, 1.0
    %v557 = vrcp.pop %v556
    %v558 = vmul.f32 %v556, %v557
    %v559 = vsub.f32 1.0, %v558
    %v560 = vmul.f32 %v557, %v559
    %v561 = vadd.f32 %v557, %v560
    %vm562 = vweird.f32 %v556
    %vm563 = vweird.f32 %v557
    %vm564 = vmor %vm562, %vm563
    %v565 = vsel %vm564, %v557, %v561
    %v566 = vand.u32 2147483647, %v556
    %vm567 = vcmp.eq.f32.partialorder %v566, 8.507059e+37
    %v568 = vand.u32 %v556, 2147483648
    %v569 = vor.u32 1.1754944e-38, %v568
    %v570 = vsel %vm567, %v569, %v565
    %v571 = vmul.f32 1.0, %v570
    %v572 = vmul.f32 %v571, %v530
    %v573 = vadd.f32 %v471, %v572
    %v574 = vtanh.pop %v573
    %v575 = vmul.f32 %v551, %v464
    %v576 = vsub.f32 1.0, %v551
    %v577 = vmul.f32 %v576, %v574
    %v578 = vadd.f32 %v575, %v577
    %s579 = scalar_lea.vmem [#allocation3], 8
    %580 = vst [vmem:[%s579] sm:$0xff] %v578
    %s581 = smul.u32 2, 3
    %s582 = smul.addr %s581, 8
    %s583 = scalar_lea.vmem [#allocation2], %s582
    %v584 = vld [vmem:[%s583] sm:$0xff]
    %v585 = vld [vmem:[%s583 + $0x8] sm:$0xff]
    %v586 = vld [vmem:[%s583 + $0x10] sm:$0xff]
    %587 = vmatpush.msra.mxu0 %v348
    %588 = vmatpush.msra.mxu0 %v345
    %589 = vmatpush.msra.mxu0 %v342
    %590 = vmatpush.msra.mxu0 %v339
    %591 = vmatpush.msra.mxu0 %v336
    %592 = vmatpush.msra.mxu0 %v333
    %593 = vmatpush.msra.mxu0 %v330
    %594 = vmatpush.msra.mxu0 %v327
    %595 = vmatpush.msra.mxu0 %v324
    %596 = vmatpush.msra.mxu0 %v321
    %597 = vmatpush.msra.mxu0 %v318
    %598 = vmatpush.msra.mxu0 %v315
    %599 = vmatpush.msra.mxu0 %v312
    %600 = vmatpush.msra.mxu0 %v309
    %601 = vmatpush.msra.mxu0 %v306
    %602 = vmatpush.msra.mxu0 %v303
    %603 = vmatmul.f32.gmra.mxu0 %v578
    %v604 = vpop.f32.mrf.mxu0
    %v605 = vadd.f32 0.0, %v604
    %606 = vdwg.mxu0
    %607 = vmatpush.msra.mxu0 %v349
    %608 = vmatpush.msra.mxu0 %v346
    %609 = vmatpush.msra.mxu0 %v343
    %610 = vmatpush.msra.mxu0 %v340
    %611 = vmatpush.msra.mxu0 %v337
    %612 = vmatpush.msra.mxu0 %v334
    %613 = vmatpush.msra.mxu0 %v331
    %614 = vmatpush.msra.mxu0 %v328
    %615 = vmatpush.msra.mxu0 %v325
    %616 = vmatpush.msra.mxu0 %v322
    %617 = vmatpush.msra.mxu0 %v319
    %618 = vmatpush.msra.mxu0 %v316
    %619 = vmatpush.msra.mxu0 %v313
    %620 = vmatpush.msra.mxu0 %v310
    %621 = vmatpush.msra.mxu0 %v307
    %622 = vmatpush.msra.mxu0 %v304
    %623 = vmatmul.f32.gmra.mxu0 %v578
    %v624 = vpop.f32.mrf.mxu0
    %v625 = vadd.f32 0.0, %v624
    %626 = vdwg.mxu0
    %627 = vmatpush.msra.mxu0 %v350
    %628 = vmatpush.msra.mxu0 %v347
    %629 = vmatpush.msra.mxu0 %v344
    %630 = vmatpush.msra.mxu0 %v341
    %631 = vmatpush.msra.mxu0 %v338
    %632 = vmatpush.msra.mxu0 %v335
    %633 = vmatpush.msra.mxu0 %v332
    %634 = vmatpush.msra.mxu0 %v329
    %635 = vmatpush.msra.mxu0 %v326
    %636 = vmatpush.msra.mxu0 %v323
    %637 = vmatpush.msra.mxu0 %v320
    %638 = vmatpush.msra.mxu0 %v317
    %639 = vmatpush.msra.mxu0 %v314
    %640 = vmatpush.msra.mxu0 %v311
    %641 = vmatpush.msra.mxu0 %v308
    %642 = vmatpush.msra.mxu0 %v305
    %643 = vmatmul.f32.gmra.mxu0 %v578
    %v644 = vpop.f32.mrf.mxu0
    %v645 = vadd.f32 0.0, %v644
    %646 = vdwg.mxu0
    %v647 = vadd.f32 %v584, %v605
    %v648 = vxor.u32 %v647, 2147483648
    %v649 = vmul.f32 %v648, 1.442695
    %v650 = vpow.pop %v649
    %v651 = vadd.f32 %v650, 1.0
    %v652 = vrcp.pop %v651
    %v653 = vmul.f32 %v651, %v652
    %v654 = vsub.f32 1.0, %v653
    %v655 = vmul.f32 %v652, %v654
    %v656 = vadd.f32 %v652, %v655
    %vm657 = vweird.f32 %v651
    %vm658 = vweird.f32 %v652
    %vm659 = vmor %vm657, %vm658
    %v660 = vsel %vm659, %v652, %v656
    %v661 = vand.u32 2147483647, %v651
    %vm662 = vcmp.eq.f32.partialorder %v661, 8.507059e+37
    %v663 = vand.u32 %v651, 2147483648
    %v664 = vor.u32 1.1754944e-38, %v663
    %v665 = vsel %vm662, %v664, %v660
    %v666 = vmul.f32 1.0, %v665
    %v667 = vadd.f32 %v585, %v625
    %v668 = vxor.u32 %v667, 2147483648
    %v669 = vmul.f32 %v668, 1.442695
    %v670 = vpow.pop %v669
    %v671 = vadd.f32 %v670, 1.0
    %v672 = vrcp.pop %v671
    %v673 = vmul.f32 %v671, %v672
    %v674 = vsub.f32 1.0, %v673
    %v675 = vmul.f32 %v672, %v674
    %v676 = vadd.f32 %v672, %v675
    %vm677 = vweird.f32 %v671
    %vm678 = vweird.f32 %v672
    %vm679 = vmor %vm677, %vm678
    %v680 = vsel %vm679, %v672, %v676
    %v681 = vand.u32 2147483647, %v671
    %vm682 = vcmp.eq.f32.partialorder %v681, 8.507059e+37
    %v683 = vand.u32 %v671, 2147483648
    %v684 = vor.u32 1.1754944e-38, %v683
    %v685 = vsel %vm682, %v684, %v680
    %v686 = vmul.f32 1.0, %v685
    %v687 = vmul.f32 %v686, %v645
    %v688 = vadd.f32 %v586, %v687
    %v689 = vtanh.pop %v688
    %v690 = vmul.f32 %v666, %v578
    %v691 = vsub.f32 1.0, %v666
    %v692 = vmul.f32 %v691, %v689
    %v693 = vadd.f32 %v690, %v692
    %s694 = scalar_lea.vmem [#allocation3], 16
    %695 = vst [vmem:[%s694] sm:$0xff] %v693
    %s696 = smul.u32 3, 3
    %s697 = smul.addr %s696, 8
    %s698 = scalar_lea.vmem [#allocation2], %s697
    %v699 = vld [vmem:[%s698] sm:$0xff]
    %v700 = vld [vmem:[%s698 + $0x8] sm:$0xff]
    %v701 = vld [vmem:[%s698 + $0x10] sm:$0xff]
    %702 = vmatpush.msra.mxu0 %v348
    %703 = vmatpush.msra.mxu0 %v345
    %704 = vmatpush.msra.mxu0 %v342
    %705 = vmatpush.msra.mxu0 %v339
    %706 = vmatpush.msra.mxu0 %v336
    %707 = vmatpush.msra.mxu0 %v333
    %708 = vmatpush.msra.mxu0 %v330
    %709 = vmatpush.msra.mxu0 %v327
    %710 = vmatpush.msra.mxu0 %v324
    %711 = vmatpush.msra.mxu0 %v321
    %712 = vmatpush.msra.mxu0 %v318
    %713 = vmatpush.msra.mxu0 %v315
    %714 = vmatpush.msra.mxu0 %v312
    %715 = vmatpush.msra.mxu0 %v309
    %716 = vmatpush.msra.mxu0 %v306
    %717 = vmatpush.msra.mxu0 %v303
    %718 = vmatmul.f32.gmra.mxu0 %v693
    %v719 = vpop.f32.mrf.mxu0
    %v720 = vadd.f32 0.0, %v719
    %721 = vdwg.mxu0
    %722 = vmatpush.msra.mxu0 %v349
    %723 = vmatpush.msra.mxu0 %v346
    %724 = vmatpush.msra.mxu0 %v343
    %725 = vmatpush.msra.mxu0 %v340
    %726 = vmatpush.msra.mxu0 %v337
    %727 = vmatpush.msra.mxu0 %v334
    %728 = vmatpush.msra.mxu0 %v331
    %729 = vmatpush.msra.mxu0 %v328
    %730 = vmatpush.msra.mxu0 %v325
    %731 = vmatpush.msra.mxu0 %v322
    %732 = vmatpush.msra.mxu0 %v319
    %733 = vmatpush.msra.mxu0 %v316
    %734 = vmatpush.msra.mxu0 %v313
    %735 = vmatpush.msra.mxu0 %v310
    %736 = vmatpush.msra.mxu0 %v307
    %737 = vmatpush.msra.mxu0 %v304
    %738 = vmatmul.f32.gmra.mxu0 %v693
    %v739 = vpop.f32.mrf.mxu0
    %v740 = vadd.f32 0.0, %v739
    %741 = vdwg.mxu0
    %742 = vmatpush.msra.mxu0 %v350
    %743 = vmatpush.msra.mxu0 %v347
    %744 = vmatpush.msra.mxu0 %v344
    %745 = vmatpush.msra.mxu0 %v341
    %746 = vmatpush.msra.mxu0 %v338
    %747 = vmatpush.msra.mxu0 %v335
    %748 = vmatpush.msra.mxu0 %v332
    %749 = vmatpush.msra.mxu0 %v329
    %750 = vmatpush.msra.mxu0 %v326
    %751 = vmatpush.msra.mxu0 %v323
    %752 = vmatpush.msra.mxu0 %v320
    %753 = vmatpush.msra.mxu0 %v317
    %754 = vmatpush.msra.mxu0 %v314
    %755 = vmatpush.msra.mxu0 %v311
    %756 = vmatpush.msra.mxu0 %v308
    %757 = vmatpush.msra.mxu0 %v305
    %758 = vmatmul.f32.gmra.mxu0 %v693
    %v759 = vpop.f32.mrf.mxu0
    %v760 = vadd.f32 0.0, %v759
    %761 = vdwg.mxu0
    %v762 = vadd.f32 %v699, %v720
    %v763 = vxor.u32 %v762, 2147483648
    %v764 = vmul.f32 %v763, 1.442695
    %v765 = vpow.pop %v764
    %v766 = vadd.f32 %v765, 1.0
    %v767 = vrcp.pop %v766
    %v768 = vmul.f32 %v766, %v767
    %v769 = vsub.f32 1.0, %v768
    %v770 = vmul.f32 %v767, %v769
    %v771 = vadd.f32 %v767, %v770
    %vm772 = vweird.f32 %v766
    %vm773 = vweird.f32 %v767
    %vm774 = vmor %vm772, %vm773
    %v775 = vsel %vm774, %v767, %v771
    %v776 = vand.u32 2147483647, %v766
    %vm777 = vcmp.eq.f32.partialorder %v776, 8.507059e+37
    %v778 = vand.u32 %v766, 2147483648
    %v779 = vor.u32 1.1754944e-38, %v778
    %v780 = vsel %vm777, %v779, %v775
    %v781 = vmul.f32 1.0, %v780
    %v782 = vadd.f32 %v700, %v740
    %v783 = vxor.u32 %v782, 2147483648
    %v784 = vmul.f32 %v783, 1.442695
    %v785 = vpow.pop %v784
    %v786 = vadd.f32 %v785, 1.0
    %v787 = vrcp.pop %v786
    %v788 = vmul.f32 %v786, %v787
    %v789 = vsub.f32 1.0, %v788
    %v790 = vmul.f32 %v787, %v789
    %v791 = vadd.f32 %v787, %v790
    %vm792 = vweird.f32 %v786
    %vm793 = vweird.f32 %v787
    %vm794 = vmor %vm792, %vm793
    %v795 = vsel %vm794, %v787, %v791
    %v796 = vand.u32 2147483647, %v786
    %vm797 = vcmp.eq.f32.partialorder %v796, 8.507059e+37
    %v798 = vand.u32 %v786, 2147483648
    %v799 = vor.u32 1.1754944e-38, %v798
    %v800 = vsel %vm797, %v799, %v795
    %v801 = vmul.f32 1.0, %v800
    %v802 = vmul.f32 %v801, %v760
    %v803 = vadd.f32 %v701, %v802
    %v804 = vtanh.pop %v803
    %v805 = vmul.f32 %v781, %v693
    %v806 = vsub.f32 1.0, %v781
    %v807 = vmul.f32 %v806, %v804
    %v808 = vadd.f32 %v805, %v807
    %s809 = scalar_lea.vmem [#allocation3], 24
    %810 = vst [vmem:[%s809] sm:$0xff] %v808
    %s811 = smul.u32 4, 3
    %s812 = smul.addr %s811, 8
    %s813 = scalar_lea.vmem [#allocation2], %s812
    %v814 = vld [vmem:[%s813] sm:$0xff]
    %v815 = vld [vmem:[%s813 + $0x8] sm:$0xff]
    %v816 = vld [vmem:[%s813 + $0x10] sm:$0xff]
    %817 = vmatpush.msra.mxu0 %v348
    %818 = vmatpush.msra.mxu0 %v345
    %819 = vmatpush.msra.mxu0 %v342
    %820 = vmatpush.msra.mxu0 %v339
    %821 = vmatpush.msra.mxu0 %v336
    %822 = vmatpush.msra.mxu0 %v333
    %823 = vmatpush.msra.mxu0 %v330
    %824 = vmatpush.msra.mxu0 %v327
    %825 = vmatpush.msra.mxu0 %v324
    %826 = vmatpush.msra.mxu0 %v321
    %827 = vmatpush.msra.mxu0 %v318
    %828 = vmatpush.msra.mxu0 %v315
    %829 = vmatpush.msra.mxu0 %v312
    %830 = vmatpush.msra.mxu0 %v309
    %831 = vmatpush.msra.mxu0 %v306
    %832 = vmatpush.msra.mxu0 %v303
    %833 = vmatmul.f32.gmra.mxu0 %v808
    %v834 = vpop.f32.mrf.mxu0
    %v835 = vadd.f32 0.0, %v834
    %836 = vdwg.mxu0
    %837 = vmatpush.msra.mxu0 %v349
    %838 = vmatpush.msra.mxu0 %v346
    %839 = vmatpush.msra.mxu0 %v343
    %840 = vmatpush.msra.mxu0 %v340
    %841 = vmatpush.msra.mxu0 %v337
    %842 = vmatpush.msra.mxu0 %v334
    %843 = vmatpush.msra.mxu0 %v331
    %844 = vmatpush.msra.mxu0 %v328
    %845 = vmatpush.msra.mxu0 %v325
    %846 = vmatpush.msra.mxu0 %v322
    %847 = vmatpush.msra.mxu0 %v319
    %848 = vmatpush.msra.mxu0 %v316
    %849 = vmatpush.msra.mxu0 %v313
    %850 = vmatpush.msra.mxu0 %v310
    %851 = vmatpush.msra.mxu0 %v307
    %852 = vmatpush.msra.mxu0 %v304
    %853 = vmatmul.f32.gmra.mxu0 %v808
    %v854 = vpop.f32.mrf.mxu0
    %v855 = vadd.f32 0.0, %v854
    %856 = vdwg.mxu0
    %857 = vmatpush.msra.mxu0 %v350
    %858 = vmatpush.msra.mxu0 %v347
    %859 = vmatpush.msra.mxu0 %v344
    %860 = vmatpush.msra.mxu0 %v341
    %861 = vmatpush.msra.mxu0 %v338
    %862 = vmatpush.msra.mxu0 %v335
    %863 = vmatpush.msra.mxu0 %v332
    %864 = vmatpush.msra.mxu0 %v329
    %865 = vmatpush.msra.mxu0 %v326
    %866 = vmatpush.msra.mxu0 %v323
    %867 = vmatpush.msra.mxu0 %v320
    %868 = vmatpush.msra.mxu0 %v317
    %869 = vmatpush.msra.mxu0 %v314
    %870 = vmatpush.msra.mxu0 %v311
    %871 = vmatpush.msra.mxu0 %v308
    %872 = vmatpush.msra.mxu0 %v305
    %873 = vmatmul.f32.gmra.mxu0 %v808
    %v874 = vpop.f32.mrf.mxu0
    %v875 = vadd.f32 0.0, %v874
    %876 = vdwg.mxu0
    %v877 = vadd.f32 %v814, %v835
    %v878 = vxor.u32 %v877, 2147483648
    %v879 = vmul.f32 %v878, 1.442695
    %v880 = vpow.pop %v879
    %v881 = vadd.f32 %v880, 1.0
    %v882 = vrcp.pop %v881
    %v883 = vmul.f32 %v881, %v882
    %v884 = vsub.f32 1.0, %v883
    %v885 = vmul.f32 %v882, %v884
    %v886 = vadd.f32 %v882, %v885
    %vm887 = vweird.f32 %v881
    %vm888 = vweird.f32 %v882
    %vm889 = vmor %vm887, %vm888
    %v890 = vsel %vm889, %v882, %v886
    %v891 = vand.u32 2147483647, %v881
    %vm892 = vcmp.eq.f32.partialorder %v891, 8.507059e+37
    %v893 = vand.u32 %v881, 2147483648
    %v894 = vor.u32 1.1754944e-38, %v893
    %v895 = vsel %vm892, %v894, %v890
    %v896 = vmul.f32 1.0, %v895
    %v897 = vadd.f32 %v815, %v855
    %v898 = vxor.u32 %v897, 2147483648
    %v899 = vmul.f32 %v898, 1.442695
    %v900 = vpow.pop %v899
    %v901 = vadd.f32 %v900, 1.0
    %v902 = vrcp.pop %v901
    %v903 = vmul.f32 %v901, %v902
    %v904 = vsub.f32 1.0, %v903
    %v905 = vmul.f32 %v902, %v904
    %v906 = vadd.f32 %v902, %v905
    %vm907 = vweird.f32 %v901
    %vm908 = vweird.f32 %v902
    %vm909 = vmor %vm907, %vm908
    %v910 = vsel %vm909, %v902, %v906
    %v911 = vand.u32 2147483647, %v901
    %vm912 = vcmp.eq.f32.partialorder %v911, 8.507059e+37
    %v913 = vand.u32 %v901, 2147483648
    %v914 = vor.u32 1.1754944e-38, %v913
    %v915 = vsel %vm912, %v914, %v910
    %v916 = vmul.f32 1.0, %v915
    %v917 = vmul.f32 %v916, %v875
    %v918 = vadd.f32 %v816, %v917
    %v919 = vtanh.pop %v918
    %v920 = vmul.f32 %v896, %v808
    %v921 = vsub.f32 1.0, %v896
    %v922 = vmul.f32 %v921, %v919
    %v923 = vadd.f32 %v920, %v922
    %s924 = scalar_lea.vmem [#allocation3], 32
    %925 = vst [vmem:[%s924] sm:$0xff] %v923
    %s926 = smul.u32 5, 3
    %s927 = smul.addr %s926, 8
    %s928 = scalar_lea.vmem [#allocation2], %s927
    %v929 = vld [vmem:[%s928] sm:$0xff]
    %v930 = vld [vmem:[%s928 + $0x8] sm:$0xff]
    %v931 = vld [vmem:[%s928 + $0x10] sm:$0xff]
    %932 = vmatpush.msra.mxu0 %v348
    %933 = vmatpush.msra.mxu0 %v345
    %934 = vmatpush.msra.mxu0 %v342
    %935 = vmatpush.msra.mxu0 %v339
    %936 = vmatpush.msra.mxu0 %v336
    %937 = vmatpush.msra.mxu0 %v333
    %938 = vmatpush.msra.mxu0 %v330
    %939 = vmatpush.msra.mxu0 %v327
    %940 = vmatpush.msra.mxu0 %v324
    %941 = vmatpush.msra.mxu0 %v321
    %942 = vmatpush.msra.mxu0 %v318
    %943 = vmatpush.msra.mxu0 %v315
    %944 = vmatpush.msra.mxu0 %v312
    %945 = vmatpush.msra.mxu0 %v309
    %946 = vmatpush.msra.mxu0 %v306
    %947 = vmatpush.msra.mxu0 %v303
    %948 = vmatmul.f32.gmra.mxu0 %v923
    %v949 = vpop.f32.mrf.mxu0
    %v950 = vadd.f32 0.0, %v949
    %951 = vdwg.mxu0
    %952 = vmatpush.msra.mxu0 %v349
    %953 = vmatpush.msra.mxu0 %v346
    %954 = vmatpush.msra.mxu0 %v343
    %955 = vmatpush.msra.mxu0 %v340
    %956 = vmatpush.msra.mxu0 %v337
    %957 = vmatpush.msra.mxu0 %v334
    %958 = vmatpush.msra.mxu0 %v331
    %959 = vmatpush.msra.mxu0 %v328
    %960 = vmatpush.msra.mxu0 %v325
    %961 = vmatpush.msra.mxu0 %v322
    %962 = vmatpush.msra.mxu0 %v319
    %963 = vmatpush.msra.mxu0 %v316
    %964 = vmatpush.msra.mxu0 %v313
    %965 = vmatpush.msra.mxu0 %v310
    %966 = vmatpush.msra.mxu0 %v307
    %967 = vmatpush.msra.mxu0 %v304
    %968 = vmatmul.f32.gmra.mxu0 %v923
    %v969 = vpop.f32.mrf.mxu0
    %v970 = vadd.f32 0.0, %v969
    %971 = vdwg.mxu0
    %972 = vmatpush.msra.mxu0 %v350
    %973 = vmatpush.msra.mxu0 %v347
    %974 = vmatpush.msra.mxu0 %v344
    %975 = vmatpush.msra.mxu0 %v341
    %976 = vmatpush.msra.mxu0 %v338
    %977 = vmatpush.msra.mxu0 %v335
    %978 = vmatpush.msra.mxu0 %v332
    %979 = vmatpush.msra.mxu0 %v329
    %980 = vmatpush.msra.mxu0 %v326
    %981 = vmatpush.msra.mxu0 %v323
    %982 = vmatpush.msra.mxu0 %v320
    %983 = vmatpush.msra.mxu0 %v317
    %984 = vmatpush.msra.mxu0 %v314
    %985 = vmatpush.msra.mxu0 %v311
    %986 = vmatpush.msra.mxu0 %v308
    %987 = vmatpush.msra.mxu0 %v305
    %988 = vmatmul.f32.gmra.mxu0 %v923
    %v989 = vpop.f32.mrf.mxu0
    %v990 = vadd.f32 0.0, %v989
    %991 = vdwg.mxu0
    %v992 = vadd.f32 %v929, %v950
    %v993 = vxor.u32 %v992, 2147483648
    %v994 = vmul.f32 %v993, 1.442695
    %v995 = vpow.pop %v994
    %v996 = vadd.f32 %v995, 1.0
    %v997 = vrcp.pop %v996
    %v998 = vmul.f32 %v996, %v997
    %v999 = vsub.f32 1.0, %v998
    %v1000 = vmul.f32 %v997, %v999
    %v1001 = vadd.f32 %v997, %v1000
    %vm1002 = vweird.f32 %v996
    %vm1003 = vweird.f32 %v997
    %vm1004 = vmor %vm1002, %vm1003
    %v1005 = vsel %vm1004, %v997, %v1001
    %v1006 = vand.u32 2147483647, %v996
    %vm1007 = vcmp.eq.f32.partialorder %v1006, 8.507059e+37
    %v1008 = vand.u32 %v996, 2147483648
    %v1009 = vor.u32 1.1754944e-38, %v1008
    %v1010 = vsel %vm1007, %v1009, %v1005
    %v1011 = vmul.f32 1.0, %v1010
    %v1012 = vadd.f32 %v930, %v970
    %v1013 = vxor.u32 %v1012, 2147483648
    %v1014 = vmul.f32 %v1013, 1.442695
    %v1015 = vpow.pop %v1014
    %v1016 = vadd.f32 %v1015, 1.0
    %v1017 = vrcp.pop %v1016
    %v1018 = vmul.f32 %v1016, %v1017
    %v1019 = vsub.f32 1.0, %v1018
    %v1020 = vmul.f32 %v1017, %v1019
    %v1021 = vadd.f32 %v1017, %v1020
    %vm1022 = vweird.f32 %v1016
    %vm1023 = vweird.f32 %v1017
    %vm1024 = vmor %vm1022, %vm1023
    %v1025 = vsel %vm1024, %v1017, %v1021
    %v1026 = vand.u32 2147483647, %v1016
    %vm1027 = vcmp.eq.f32.partialorder %v1026, 8.507059e+37
    %v1028 = vand.u32 %v1016, 2147483648
    %v1029 = vor.u32 1.1754944e-38, %v1028
    %v1030 = vsel %vm1027, %v1029, %v1025
    %v1031 = vmul.f32 1.0, %v1030
    %v1032 = vmul.f32 %v1031, %v990
    %v1033 = vadd.f32 %v931, %v1032
    %v1034 = vtanh.pop %v1033
    %v1035 = vmul.f32 %v1011, %v923
    %v1036 = vsub.f32 1.0, %v1011
    %v1037 = vmul.f32 %v1036, %v1034
    %v1038 = vadd.f32 %v1035, %v1037
    %s1039 = scalar_lea.vmem [#allocation3], 40
    %1040 = vst [vmem:[%s1039] sm:$0xff] %v1038
    %s1041 = smul.u32 6, 3
    %s1042 = smul.addr %s1041, 8
    %s1043 = scalar_lea.vmem [#allocation2], %s1042
    %v1044 = vld [vmem:[%s1043] sm:$0xff]
    %v1045 = vld [vmem:[%s1043 + $0x8] sm:$0xff]
    %v1046 = vld [vmem:[%s1043 + $0x10] sm:$0xff]
    %1047 = vmatpush.msra.mxu0 %v348
    %1048 = vmatpush.msra.mxu0 %v345
    %1049 = vmatpush.msra.mxu0 %v342
    %1050 = vmatpush.msra.mxu0 %v339
    %1051 = vmatpush.msra.mxu0 %v336
    %1052 = vmatpush.msra.mxu0 %v333
    %1053 = vmatpush.msra.mxu0 %v330
    %1054 = vmatpush.msra.mxu0 %v327
    %1055 = vmatpush.msra.mxu0 %v324
    %1056 = vmatpush.msra.mxu0 %v321
    %1057 = vmatpush.msra.mxu0 %v318
    %1058 = vmatpush.msra.mxu0 %v315
    %1059 = vmatpush.msra.mxu0 %v312
    %1060 = vmatpush.msra.mxu0 %v309
    %1061 = vmatpush.msra.mxu0 %v306
    %1062 = vmatpush.msra.mxu0 %v303
    %1063 = vmatmul.f32.gmra.mxu0 %v1038
    %v1064 = vpop.f32.mrf.mxu0
    %v1065 = vadd.f32 0.0, %v1064
    %1066 = vdwg.mxu0
    %1067 = vmatpush.msra.mxu0 %v349
    %1068 = vmatpush.msra.mxu0 %v346
    %1069 = vmatpush.msra.mxu0 %v343
    %1070 = vmatpush.msra.mxu0 %v340
    %1071 = vmatpush.msra.mxu0 %v337
    %1072 = vmatpush.msra.mxu0 %v334
    %1073 = vmatpush.msra.mxu0 %v331
    %1074 = vmatpush.msra.mxu0 %v328
    %1075 = vmatpush.msra.mxu0 %v325
    %1076 = vmatpush.msra.mxu0 %v322
    %1077 = vmatpush.msra.mxu0 %v319
    %1078 = vmatpush.msra.mxu0 %v316
    %1079 = vmatpush.msra.mxu0 %v313
    %1080 = vmatpush.msra.mxu0 %v310
    %1081 = vmatpush.msra.mxu0 %v307
    %1082 = vmatpush.msra.mxu0 %v304
    %1083 = vmatmul.f32.gmra.mxu0 %v1038
    %v1084 = vpop.f32.mrf.mxu0
    %v1085 = vadd.f32 0.0, %v1084
    %1086 = vdwg.mxu0
    %1087 = vmatpush.msra.mxu0 %v350
    %1088 = vmatpush.msra.mxu0 %v347
    %1089 = vmatpush.msra.mxu0 %v344
    %1090 = vmatpush.msra.mxu0 %v341
    %1091 = vmatpush.msra.mxu0 %v338
    %1092 = vmatpush.msra.mxu0 %v335
    %1093 = vmatpush.msra.mxu0 %v332
    %1094 = vmatpush.msra.mxu0 %v329
    %1095 = vmatpush.msra.mxu0 %v326
    %1096 = vmatpush.msra.mxu0 %v323
    %1097 = vmatpush.msra.mxu0 %v320
    %1098 = vmatpush.msra.mxu0 %v317
    %1099 = vmatpush.msra.mxu0 %v314
    %1100 = vmatpush.msra.mxu0 %v311
    %1101 = vmatpush.msra.mxu0 %v308
    %1102 = vmatpush.msra.mxu0 %v305
    %1103 = vmatmul.f32.gmra.mxu0 %v1038
    %v1104 = vpop.f32.mrf.mxu0
    %v1105 = vadd.f32 0.0, %v1104
    %1106 = vdwg.mxu0
    %v1107 = vadd.f32 %v1044, %v1065
    %v1108 = vxor.u32 %v1107, 2147483648
    %v1109 = vmul.f32 %v1108, 1.442695
    %v1110 = vpow.pop %v1109
    %v1111 = vadd.f32 %v1110, 1.0
    %v1112 = vrcp.pop %v1111
    %v1113 = vmul.f32 %v1111, %v1112
    %v1114 = vsub.f32 1.0, %v1113
    %v1115 = vmul.f32 %v1112, %v1114
    %v1116 = vadd.f32 %v1112, %v1115
    %vm1117 = vweird.f32 %v1111
    %vm1118 = vweird.f32 %v1112
    %vm1119 = vmor %vm1117, %vm1118
    %v1120 = vsel %vm1119, %v1112, %v1116
    %v1121 = vand.u32 2147483647, %v1111
    %vm1122 = vcmp.eq.f32.partialorder %v1121, 8.507059e+37
    %v1123 = vand.u32 %v1111, 2147483648
    %v1124 = vor.u32 1.1754944e-38, %v1123
    %v1125 = vsel %vm1122, %v1124, %v1120
    %v1126 = vmul.f32 1.0, %v1125
    %v1127 = vadd.f32 %v1045, %v1085
    %v1128 = vxor.u32 %v1127, 2147483648
    %v1129 = vmul.f32 %v1128, 1.442695
    %v1130 = vpow.pop %v1129
    %v1131 = vadd.f32 %v1130, 1.0
    %v1132 = vrcp.pop %v1131
    %v1133 = vmul.f32 %v1131, %v1132
    %v1134 = vsub.f32 1.0, %v1133
    %v1135 = vmul.f32 %v1132, %v1134
    %v1136 = vadd.f32 %v1132, %v1135
    %vm1137 = vweird.f32 %v1131
    %vm1138 = vweird.f32 %v1132
    %vm1139 = vmor %vm1137, %vm1138
    %v1140 = vsel %vm1139, %v1132, %v1136
    %v1141 = vand.u32 2147483647, %v1131
    %vm1142 = vcmp.eq.f32.partialorder %v1141, 8.507059e+37
    %v1143 = vand.u32 %v1131, 2147483648
    %v1144 = vor.u32 1.1754944e-38, %v1143
    %v1145 = vsel %vm1142, %v1144, %v1140
    %v1146 = vmul.f32 1.0, %v1145
    %v1147 = vmul.f32 %v1146, %v1105
    %v1148 = vadd.f32 %v1046, %v1147
    %v1149 = vtanh.pop %v1148
    %v1150 = vmul.f32 %v1126, %v1038
    %v1151 = vsub.f32 1.0, %v1126
    %v1152 = vmul.f32 %v1151, %v1149
    %v1153 = vadd.f32 %v1150, %v1152
    %s1154 = scalar_lea.vmem [#allocation3], 48
    %1155 = vst [vmem:[%s1154] sm:$0xff] %v1153
    %s1156 = smul.u32 7, 3
    %s1157 = smul.addr %s1156, 8
    %s1158 = scalar_lea.vmem [#allocation2], %s1157
    %v1159 = vld [vmem:[%s1158] sm:$0xff]
    %v1160 = vld [vmem:[%s1158 + $0x8] sm:$0xff]
    %v1161 = vld [vmem:[%s1158 + $0x10] sm:$0xff]
    %1162 = vmatpush.msra.mxu0 %v348
    %1163 = vmatpush.msra.mxu0 %v345
    %1164 = vmatpush.msra.mxu0 %v342
    %1165 = vmatpush.msra.mxu0 %v339
    %1166 = vmatpush.msra.mxu0 %v336
    %1167 = vmatpush.msra.mxu0 %v333
    %1168 = vmatpush.msra.mxu0 %v330
    %1169 = vmatpush.msra.mxu0 %v327
    %1170 = vmatpush.msra.mxu0 %v324
    %1171 = vmatpush.msra.mxu0 %v321
    %1172 = vmatpush.msra.mxu0 %v318
    %1173 = vmatpush.msra.mxu0 %v315
    %1174 = vmatpush.msra.mxu0 %v312
    %1175 = vmatpush.msra.mxu0 %v309
    %1176 = vmatpush.msra.mxu0 %v306
    %1177 = vmatpush.msra.mxu0 %v303
    %1178 = vmatmul.f32.gmra.mxu0 %v1153
    %v1179 = vpop.f32.mrf.mxu0
    %v1180 = vadd.f32 0.0, %v1179
    %1181 = vdwg.mxu0
    %1182 = vmatpush.msra.mxu0 %v349
    %1183 = vmatpush.msra.mxu0 %v346
    %1184 = vmatpush.msra.mxu0 %v343
    %1185 = vmatpush.msra.mxu0 %v340
    %1186 = vmatpush.msra.mxu0 %v337
    %1187 = vmatpush.msra.mxu0 %v334
    %1188 = vmatpush.msra.mxu0 %v331
    %1189 = vmatpush.msra.mxu0 %v328
    %1190 = vmatpush.msra.mxu0 %v325
    %1191 = vmatpush.msra.mxu0 %v322
    %1192 = vmatpush.msra.mxu0 %v319
    %1193 = vmatpush.msra.mxu0 %v316
    %1194 = vmatpush.msra.mxu0 %v313
    %1195 = vmatpush.msra.mxu0 %v310
    %1196 = vmatpush.msra.mxu0 %v307
    %1197 = vmatpush.msra.mxu0 %v304
    %1198 = vmatmul.f32.gmra.mxu0 %v1153
    %v1199 = vpop.f32.mrf.mxu0
    %v1200 = vadd.f32 0.0, %v1199
    %1201 = vdwg.mxu0
    %1202 = vmatpush.msra.mxu0 %v350
    %1203 = vmatpush.msra.mxu0 %v347
    %1204 = vmatpush.msra.mxu0 %v344
    %1205 = vmatpush.msra.mxu0 %v341
    %1206 = vmatpush.msra.mxu0 %v338
    %1207 = vmatpush.msra.mxu0 %v335
    %1208 = vmatpush.msra.mxu0 %v332
    %1209 = vmatpush.msra.mxu0 %v329
    %1210 = vmatpush.msra.mxu0 %v326
    %1211 = vmatpush.msra.mxu0 %v323
    %1212 = vmatpush.msra.mxu0 %v320
    %1213 = vmatpush.msra.mxu0 %v317
    %1214 = vmatpush.msra.mxu0 %v314
    %1215 = vmatpush.msra.mxu0 %v311
    %1216 = vmatpush.msra.mxu0 %v308
    %1217 = vmatpush.msra.mxu0 %v305
    %1218 = vmatmul.f32.gmra.mxu0 %v1153
    %v1219 = vpop.f32.mrf.mxu0
    %v1220 = vadd.f32 0.0, %v1219
    %1221 = vdwg.mxu0
    %v1222 = vadd.f32 %v1159, %v1180
    %v1223 = vxor.u32 %v1222, 2147483648
    %v1224 = vmul.f32 %v1223, 1.442695
    %v1225 = vpow.pop %v1224
    %v1226 = vadd.f32 %v1225, 1.0
    %v1227 = vrcp.pop %v1226
    %v1228 = vmul.f32 %v1226, %v1227
    %v1229 = vsub.f32 1.0, %v1228
    %v1230 = vmul.f32 %v1227, %v1229
    %v1231 = vadd.f32 %v1227, %v1230
    %vm1232 = vweird.f32 %v1226
    %vm1233 = vweird.f32 %v1227
    %vm1234 = vmor %vm1232, %vm1233
    %v1235 = vsel %vm1234, %v1227, %v1231
    %v1236 = vand.u32 2147483647, %v1226
    %vm1237 = vcmp.eq.f32.partialorder %v1236, 8.507059e+37
    %v1238 = vand.u32 %v1226, 2147483648
    %v1239 = vor.u32 1.1754944e-38, %v1238
    %v1240 = vsel %vm1237, %v1239, %v1235
    %v1241 = vmul.f32 1.0, %v1240
    %v1242 = vadd.f32 %v1160, %v1200
    %v1243 = vxor.u32 %v1242, 2147483648
    %v1244 = vmul.f32 %v1243, 1.442695
    %v1245 = vpow.pop %v1244
    %v1246 = vadd.f32 %v1245, 1.0
    %v1247 = vrcp.pop %v1246
    %v1248 = vmul.f32 %v1246, %v1247
    %v1249 = vsub.f32 1.0, %v1248
    %v1250 = vmul.f32 %v1247, %v1249
    %v1251 = vadd.f32 %v1247, %v1250
    %vm1252 = vweird.f32 %v1246
    %vm1253 = vweird.f32 %v1247
    %vm1254 = vmor %vm1252, %vm1253
    %v1255 = vsel %vm1254, %v1247, %v1251
    %v1256 = vand.u32 2147483647, %v1246
    %vm1257 = vcmp.eq.f32.partialorder %v1256, 8.507059e+37
    %v1258 = vand.u32 %v1246, 2147483648
    %v1259 = vor.u32 1.1754944e-38, %v1258
    %v1260 = vsel %vm1257, %v1259, %v1255
    %v1261 = vmul.f32 1.0, %v1260
    %v1262 = vmul.f32 %v1261, %v1220
    %v1263 = vadd.f32 %v1161, %v1262
    %v1264 = vtanh.pop %v1263
    %v1265 = vmul.f32 %v1241, %v1153
    %v1266 = vsub.f32 1.0, %v1241
    %v1267 = vmul.f32 %v1266, %v1264
    %v1268 = vadd.f32 %v1265, %v1267
    %s1269 = scalar_lea.vmem [#allocation3], 56
    %1270 = vst [vmem:[%s1269] sm:$0xff] %v1268
    %1271 = vst [vmem:[#allocation14] sm:$0xff] %v1268
    %v1272 = vld [vmem:[#allocation3] sm:$0xff]
    %v1273 = vld [vmem:[#allocation3 + $0x8] sm:$0xff]
    %v1274 = vld [vmem:[#allocation3 + $0x10] sm:$0xff]
    %v1275 = vld [vmem:[#allocation3 + $0x18] sm:$0xff]
    %v1276 = vld [vmem:[#allocation3 + $0x20] sm:$0xff]
    %v1277 = vld [vmem:[#allocation3 + $0x28] sm:$0xff]
    %v1278 = vld [vmem:[#allocation3 + $0x30] sm:$0xff]
    %v1279 = vld [vmem:[#allocation3 + $0x38] sm:$0xff]
    %v1280 = vld [vmem:[#allocation12] sm:$0xff]
    %v1281 = vld [vmem:[#allocation12 + $0x8] sm:$0xff]
    %v1282 = vld [vmem:[#allocation12 + $0x10] sm:$0xff]
    %v1283 = vld [vmem:[#allocation12 + $0x18] sm:$0xff]
    %v1284 = vld [vmem:[#allocation12 + $0x20] sm:$0xff]
    %v1285 = vld [vmem:[#allocation12 + $0x28] sm:$0xff]
    %v1286 = vld [vmem:[#allocation12 + $0x30] sm:$0xff]
    %v1287 = vld [vmem:[#allocation12 + $0x38] sm:$0xff]
    %v1288 = vld [vmem:[#allocation12 + $0x40] sm:$0xff]
    %v1289 = vld [vmem:[#allocation12 + $0x48] sm:$0xff]
    %v1290 = vld [vmem:[#allocation12 + $0x50] sm:$0xff]
    %v1291 = vld [vmem:[#allocation12 + $0x58] sm:$0xff]
    %v1292 = vld [vmem:[#allocation12 + $0x60] sm:$0xff]
    %v1293 = vld [vmem:[#allocation12 + $0x68] sm:$0xff]
    %v1294 = vld [vmem:[#allocation12 + $0x70] sm:$0xff]
    %v1295 = vld [vmem:[#allocation12 + $0x78] sm:$0xff]
    %1296 = vmatpush.msra.mxu0 %v1295
    %1297 = vmatpush.msra.mxu0 %v1294
    %1298 = vmatpush.msra.mxu0 %v1293
    %1299 = vmatpush.msra.mxu0 %v1292
    %1300 = vmatpush.msra.mxu0 %v1291
    %1301 = vmatpush.msra.mxu0 %v1290
    %1302 = vmatpush.msra.mxu0 %v1289
    %1303 = vmatpush.msra.mxu0 %v1288
    %1304 = vmatpush.msra.mxu0 %v1287
    %1305 = vmatpush.msra.mxu0 %v1286
    %1306 = vmatpush.msra.mxu0 %v1285
    %1307 = vmatpush.msra.mxu0 %v1284
    %1308 = vmatpush.msra.mxu0 %v1283
    %1309 = vmatpush.msra.mxu0 %v1282
    %1310 = vmatpush.msra.mxu0 %v1281
    %1311 = vmatpush.msra.mxu0 %v1280
    %1312 = vmatmul.f32.gmra.mxu0 %v1272
    %v1313 = vpop.f32.mrf.mxu0
    %v1314 = vadd.f32 0.0, %v1313
    %1315 = vmatmul.f32.gmra.mxu0 %v1273
    %v1316 = vpop.f32.mrf.mxu0
    %v1317 = vadd.f32 0.0, %v1316
    %1318 = vmatmul.f32.gmra.mxu0 %v1274
    %v1319 = vpop.f32.mrf.mxu0
    %v1320 = vadd.f32 0.0, %v1319
    %1321 = vmatmul.f32.gmra.mxu0 %v1275
    %v1322 = vpop.f32.mrf.mxu0
    %v1323 = vadd.f32 0.0, %v1322
    %1324 = vmatmul.f32.gmra.mxu0 %v1276
    %v1325 = vpop.f32.mrf.mxu0
    %v1326 = vadd.f32 0.0, %v1325
    %1327 = vmatmul.f32.gmra.mxu0 %v1277
    %v1328 = vpop.f32.mrf.mxu0
    %v1329 = vadd.f32 0.0, %v1328
    %1330 = vmatmul.f32.gmra.mxu0 %v1278
    %v1331 = vpop.f32.mrf.mxu0
    %v1332 = vadd.f32 0.0, %v1331
    %1333 = vmatmul.f32.gmra.mxu0 %v1279
    %v1334 = vpop.f32.mrf.mxu0
    %v1335 = vadd.f32 0.0, %v1334
    %1336 = vdwg.mxu0
    %v1337 = vlaneseq
    %v1338 = vand.u32 %v1337, 127
    %vm1339 = vcmp.lt.s32.totalorder %v1338, 65
    %v1340 = vsel %vm1339, %v1314, -1e+30
    %v1341 = vsel %vm1339, %v1317, -1e+30
    %v1342 = vsel %vm1339, %v1320, -1e+30
    %v1343 = vsel %vm1339, %v1323, -1e+30
    %v1344 = vsel %vm1339, %v1326, -1e+30
    %v1345 = vsel %vm1339, %v1329, -1e+30
    %v1346 = vsel %vm1339, %v1332, -1e+30
    %v1347 = vsel %vm1339, %v1335, -1e+30
    %1348 = vmax.xlane.f32.xlu0 %v1340
    %v1349 = vpop.xlane.xlu0 %1348
    %1350 = vmax.xlane.f32.xlu0 %v1341
    %v1351 = vpop.xlane.xlu0 %1350
    %1352 = vmax.xlane.f32.xlu0 %v1342
    %v1353 = vpop.xlane.xlu0 %1352
    %1354 = vmax.xlane.f32.xlu0 %v1343
    %v1355 = vpop.xlane.xlu0 %1354
    %1356 = vmax.xlane.f32.xlu0 %v1344
    %v1357 = vpop.xlane.xlu0 %1356
    %1358 = vmax.xlane.f32.xlu0 %v1345
    %v1359 = vpop.xlane.xlu0 %1358
    %1360 = vmax.xlane.f32.xlu0 %v1346
    %v1361 = vpop.xlane.xlu0 %1360
    %1362 = vmax.xlane.f32.xlu0 %v1347
    %v1363 = vpop.xlane.xlu0 %1362
    %v1364 = vsub.f32 %v1340, %v1349
    %v1365 = vsub.f32 %v1341, %v1351
    %v1366 = vsub.f32 %v1342, %v1353
    %v1367 = vsub.f32 %v1343, %v1355
    %v1368 = vsub.f32 %v1344, %v1357
    %v1369 = vsub.f32 %v1345, %v1359
    %v1370 = vsub.f32 %v1346, %v1361
    %v1371 = vsub.f32 %v1347, %v1363
    %v1372 = vmul.f32 %v1364, 1.442695
    %v1373 = vpow.pop %v1372
    %v1374 = vmul.f32 %v1365, 1.442695
    %v1375 = vpow.pop %v1374
    %v1376 = vmul.f32 %v1366, 1.442695
    %v1377 = vpow.pop %v1376
    %v1378 = vmul.f32 %v1367, 1.442695
    %v1379 = vpow.pop %v1378
    %v1380 = vmul.f32 %v1368, 1.442695
    %v1381 = vpow.pop %v1380
    %v1382 = vmul.f32 %v1369, 1.442695
    %v1383 = vpow.pop %v1382
    %v1384 = vmul.f32 %v1370, 1.442695
    %v1385 = vpow.pop %v1384
    %v1386 = vmul.f32 %v1371, 1.442695
    %v1387 = vpow.pop %v1386
    %1388 = vadd.xlane.f32.xlu0 %v1373
    %v1389 = vpop.xlane.xlu0 %1388
    %1390 = vadd.xlane.f32.xlu0 %v1375
    %v1391 = vpop.xlane.xlu0 %1390
    %1392 = vadd.xlane.f32.xlu0 %v1377
    %v1393 = vpop.xlane.xlu0 %1392
    %1394 = vadd.xlane.f32.xlu0 %v1379
    %v1395 = vpop.xlane.xlu0 %1394
    %1396 = vadd.xlane.f32.xlu0 %v1381
    %v1397 = vpop.xlane.xlu0 %1396
    %1398 = vadd.xlane.f32.xlu0 %v1383
    %v1399 = vpop.xlane.xlu0 %1398
    %1400 = vadd.xlane.f32.xlu0 %v1385
    %v1401 = vpop.xlane.xlu0 %1400
    %1402 = vadd.xlane.f32.xlu0 %v1387
    %v1403 = vpop.xlane.xlu0 %1402
    %v1404 = vlog2.pop %v1389
    %v1405 = vmul.f32 %v1404, 0.6931472
    %v1406 = vlog2.pop %v1391
    %v1407 = vmul.f32 %v1406, 0.6931472
    %v1408 = vlog2.pop %v1393
    %v1409 = vmul.f32 %v1408, 0.6931472
    %v1410 = vlog2.pop %v1395
    %v1411 = vmul.f32 %v1410, 0.6931472
    %v1412 = vlog2.pop %v1397
    %v1413 = vmul.f32 %v1412, 0.6931472
    %v1414 = vlog2.pop %v1399
    %v1415 = vmul.f32 %v1414, 0.6931472
    %v1416 = vlog2.pop %v1401
    %v1417 = vmul.f32 %v1416, 0.6931472
    %v1418 = vlog2.pop %v1403
    %v1419 = vmul.f32 %v1418, 0.6931472
    %v1420 = vsub.f32 %v1364, %v1405
    %v1421 = vsub.f32 %v1365, %v1407
    %v1422 = vsub.f32 %v1366, %v1409
    %v1423 = vsub.f32 %v1367, %v1411
    %v1424 = vsub.f32 %v1368, %v1413
    %v1425 = vsub.f32 %v1369, %v1415
    %v1426 = vsub.f32 %v1370, %v1417
    %v1427 = vsub.f32 %v1371, %v1419
    %1428 = vst [vmem:[#allocation13] sm:$0xff] %v1420
    %1429 = vst [vmem:[#allocation13 + $0x8] sm:$0xff] %v1421
    %1430 = vst [vmem:[#allocation13 + $0x10] sm:$0xff] %v1422
    %1431 = vst [vmem:[#allocation13 + $0x18] sm:$0xff] %v1423
    %1432 = vst [vmem:[#allocation13 + $0x20] sm:$0xff] %v1424
    %1433 = vst [vmem:[#allocation13 + $0x28] sm:$0xff] %v1425
    %1434 = vst [vmem:[#allocation13 + $0x30] sm:$0xff] %v1426
    %1435 = vst [vmem:[#allocation13 + $0x38] sm:$0xff] %v1427
    // Predicated region
    $region42: #{tpu_custom_call.1} parent=1 // pred_check
      _
    $region43: #{tpu_custom_call.1} parent=1 // pred_check_branch
      %1437 = sbr.rel (0) target = $region45
    $region44: #{tpu_custom_call.1} parent=1 // pred_region
      %1439 = vsyncadd [#allocation6], 0
      %s1440 = sshll.u32 [#allocation13], 4
      %s1441 = int_to_ptr.vmem [resolvable:$true] %s1440
      %s1442 = sshll.u32 %s5, 4
      %s1443 = int_to_ptr.hbm [resolvable:$true] %s1442
      %1448 = dma.vmem_to_hbm [thread:$0]  %s1441, 1024, %s1443, [#allocation6], 128, 128, 8
    $region45: #{tpu_custom_call.1} parent=1 // pred_fallthru
      _
    // Predicated region
    $region46: #{tpu_custom_call.1} parent=1 // pred_check
      _
    $region47: #{tpu_custom_call.1} parent=1 // pred_check_branch
      %1450 = sbr.rel (0) target = $region49
    $region48: #{tpu_custom_call.1} parent=1 // pred_region
      %1452 = vsyncadd [#allocation15], 0
      %s1454 = sshll.u32 [#allocation14], 4
      %s1455 = int_to_ptr.vmem [resolvable:$true] %s1454
      %s1456 = sshll.u32 %s6, 4
      %s1457 = int_to_ptr.hbm [resolvable:$true] %s1456
      %1459 = dma.vmem_to_hbm [thread:$0]  %s1455, 128, %s1457, [#allocation15]
    $region49: #{tpu_custom_call.1} parent=1 // pred_fallthru
      _
    // Predicated region
    $region50: #{tpu_custom_call.1} parent=1 // pred_check
      _
    $region51: #{tpu_custom_call.1} parent=1 // pred_check_branch
      %1461 = sbr.rel (0) target = $region53
    $region52: #{tpu_custom_call.1} parent=1 // pred_region
      %1463 = dma.done [#allocation6], 1024
    $region53: #{tpu_custom_call.1} parent=1 // pred_fallthru
      _
    // Predicated region
    $region54: #{tpu_custom_call.1} parent=1 // pred_check
      _
    $region55: #{tpu_custom_call.1} parent=1 // pred_check_branch
      %1465 = sbr.rel (0) target = $region57
    $region56: #{tpu_custom_call.1} parent=1 // pred_region
      %1467 = dma.done [#allocation15], 128
    $region57: #{tpu_custom_call.1} parent=1 // pred_fallthru
      _
    %1468 = vsyncpa [#allocation5], 1
    %1469 = vsyncpa [#allocation8], 1
    %1470 = vsyncpa [#allocation11], 1
    %1471 = vsyncpa [#allocation6], 1
    %1472 = vsyncpa [#allocation15], 1

</llo_original>
